<compile_context>
chip_gen: v5e
topology: v5e:2x2
jax: 0.10.0
libtpu: 0.0.40
codegen_flags: <defaults>
</compile_context>

<pallas_src>
import functools
import math

import jax
import jax.numpy as jnp
import numpy as np
from jax import lax
from jax.experimental import pallas as pl
from jax.experimental.pallas import tpu as pltpu


# ------------------------------ fused kernel ----------------------------------
def _fused_forward_kernel(x_ref, w1_ref, b1_ref, w2_ref, b2_ref,
                          fw1_ref, fb1_ref, fw2_ref, fb2_ref, o_ref, *, K):
    BT = x_ref.shape[0]

    def conv_pool_relu(inp, w_ref, b_ref):
        # inp: (BT, Hin, Lin) with lanes = NHWC-flattened (width, channels).
        # w_ref: (K, Lin, Lout) banded weight, Lout lanes ordered
        #        (x_parity, x_pooled, cout); b_ref: (1, Lout).
        Hin = inp.shape[1]
        Hout = Hin - K + 1
        acc = None
        for ky in range(K):                       # K small static taps -> unrolled
            rows = inp[:, ky:ky + Hout, :].reshape(BT * Hout, inp.shape[-1])
            part = jnp.dot(rows, w_ref[ky], preferred_element_type=jnp.float32)
            acc = part if acc is None else acc + part
        acc = acc + b_ref[...]                    # (BT*Hout, Lout)
        # 2x2 stride-2 max pool.  Width pool: columns are (x_parity, x_pooled, c)
        # so it is a half-split max (no lane shuffles).  Height pool: pair
        # adjacent output rows.  ReLU last -> matches F.relu(F.max_pool2d(., 2)).
        half = acc.shape[-1] // 2
        px = jnp.maximum(acc[:, :half], acc[:, half:])        # (BT*Hout, half)
        px = px.reshape(BT, Hout // 2, 2, half)
        return jnp.maximum(jnp.maximum(px[:, :, 0, :], px[:, :, 1, :]), 0.0)

    x = x_ref[...].astype(jnp.float32)            # (BT, 28, 28), lanes = width
    h1 = conv_pool_relu(x, w1_ref, b1_ref)        # (BT, 12, 12*10)
    # TODO(synk): nn.Dropout2d(p=0.5) is identity in eval mode; training-mode
    # stochastic channel dropout is not implemented.
    h2 = conv_pool_relu(h1, w2_ref, b2_ref)       # (BT, 4, 4*20)

    flat = h2.reshape(BT, h2.shape[1] * h2.shape[2])          # (BT, 320) NHWC order
    hfc = jnp.dot(flat, fw1_ref[...], preferred_element_type=jnp.float32) + fb1_ref[...]
    hfc = jnp.maximum(hfc, 0.0)                               # ReLU
    logits = jnp.dot(hfc, fw2_ref[...], preferred_element_type=jnp.float32) + fb2_ref[...]
    m = jnp.max(logits, axis=-1, keepdims=True)               # stable log_softmax
    s = logits - m
    lse = jnp.log(jnp.sum(jnp.exp(s), axis=-1, keepdims=True))
    o_ref[...] = (s - lse).astype(o_ref.dtype)


# --------------------------------- wrapper -------------------------------------
def my_network_forward(x_nchw, params, *, max_batch_tile=8):
    (c1w, c1b, c2w, c2b, f1w, f1b, f2w, f2b) = params
    B, Cin, H, W = x_nchw.shape
    assert Cin == 1, "MyNetwork's conv1 takes a single input channel"
    K = c1w.shape[-1]
    C1, C2 = c1w.shape[0], c2w.shape[0]
    H1, W1 = H - K + 1, W - K + 1                            # 24, 24
    Hp1, Wp1 = H1 // 2, W1 // 2                              # 12, 12
    H2, W2 = Hp1 - K + 1, Wp1 - K + 1                        # 8, 8
    Hp2, Wp2 = H2 // 2, W2 // 2                              # 4, 4
    feat = Hp2 * Wp2 * C2                                    # 320
    n_hidden, n_out = f1w.shape[0], f2w.shape[0]
    f32 = jnp.float32

    # conv1 banded weight: band1[ky, xi, xo_lo*(Wp1*C1) + xo_hi*C1 + co]
    #   = c1w[co, 0, ky, xi - xo]  for xo = 2*xo_hi + xo_lo, 0 <= xi-xo < K.
    w1hk = jnp.transpose(c1w[:, 0], (1, 2, 0)).astype(f32)   # (K, K, C1) [ky,kx,co]
    xi = jnp.arange(W)[:, None]
    xo = jnp.arange(W1)[None, :]
    kx = xi - xo
    v1 = ((kx >= 0) & (kx < K)).astype(f32)
    band1 = w1hk[:, jnp.clip(kx, 0, K - 1), :] * v1[None, :, :, None]   # (K,W,W1,C1)
    band1 = band1.reshape(K, W, Wp1, 2, C1).transpose(0, 1, 3, 2, 4)
    band1 = band1.reshape(K, W, W1 * C1)                                # (K, 28, 240)
    b1 = jnp.tile(c1b.astype(f32), W1).reshape(1, W1 * C1)

    # conv2 banded weight: rows = (xi, ci), cols = (xo_lo, xo_hi, co).
    w2hk = jnp.transpose(c2w, (2, 3, 1, 0)).astype(f32)      # (K, K, C1, C2)
    xi2 = jnp.arange(Wp1)[:, None]
    xo2 = jnp.arange(W2)[None, :]
    kx2 = xi2 - xo2
    v2 = ((kx2 >= 0) & (kx2 < K)).astype(f32)
    band2 = w2hk[:, jnp.clip(kx2, 0, K - 1)] * v2[None, :, :, None, None]  # (K,Wp1,W2,C1,C2)
    band2 = band2.transpose(0, 1, 3, 2, 4)                    # (K, Wp1, C1, W2, C2)
    band2 = band2.reshape(K, Wp1, C1, Wp2, 2, C2).transpose(0, 1, 2, 4, 3, 5)
    band2 = band2.reshape(K, Wp1 * C1, W2 * C2)               # (K, 120, 160)
    b2 = jnp.tile(c2b.astype(f32), W2).reshape(1, W2 * C2)

    # fc1: fold the NCHW-flatten permutation into the weight (host-side relayout),
    # so the kernel's NHWC-flattened activations hit fc1 directly.
    fw1 = jnp.transpose(f1w.reshape(n_hidden, C2, Hp2, Wp2), (0, 2, 3, 1))
    fw1 = fw1.reshape(n_hidden, feat).T.astype(f32)           # (320, 50)
    fb1 = f1b.reshape(1, n_hidden).astype(f32)
    fw2 = f2w.T.astype(f32)                                   # (50, 10)
    fb2 = f2b.reshape(1, n_out).astype(f32)

    x = x_nchw.reshape(B, H, W).astype(f32)                   # drop Cin=1, W on lanes

    # Batch tiling: one grid step per batch tile; "parallel" lets a multi-core
    # chip split the batch.  Small batches run as a single tile.
    if B <= max_batch_tile:
        BT, Bp = B, B
    else:
        BT = max_batch_tile                                   # multiple of 8
        Bp = pl.cdiv(B, BT) * BT
        if Bp != B:
            x = jnp.pad(x, ((0, Bp - B), (0, 0), (0, 0)))

    kern = functools.partial(_fused_forward_kernel, K=K)
    out = pl.pallas_call(
        kern,
        out_shape=jax.ShapeDtypeStruct((Bp, n_out), jnp.float32),
        grid=(Bp // BT,),
        in_specs=[
            pl.BlockSpec((BT, H, W), lambda i: (i, 0, 0)),
            pl.BlockSpec((K, W, W1 * C1), lambda i: (0, 0, 0)),
            pl.BlockSpec((1, W1 * C1), lambda i: (0, 0)),
            pl.BlockSpec((K, Wp1 * C1, W2 * C2), lambda i: (0, 0, 0)),
            pl.BlockSpec((1, W2 * C2), lambda i: (0, 0)),
            pl.BlockSpec((feat, n_hidden), lambda i: (0, 0)),
            pl.BlockSpec((1, n_hidden), lambda i: (0, 0)),
            pl.BlockSpec((n_hidden, n_out), lambda i: (0, 0)),
            pl.BlockSpec((1, n_out), lambda i: (0, 0)),
        ],
        out_specs=pl.BlockSpec((BT, n_out), lambda i: (i, 0)),
        compiler_params=pltpu.CompilerParams(
            dimension_semantics=("parallel",)),
    )(x, band1, b1, band2, b2, fw1, fb1, fw2, fb2)
    return out[:B]


# ------------------------------ pure-JAX reference ------------------------------
def reference_forward(x, params):
    (c1w, c1b, c2w, c2b, f1w, f1b, f2w, f2b) = params
    dn = ("NCHW", "OIHW", "NCHW")

    def conv_block(y, w, b):
        y = lax.conv_general_dilated(y, w, (1, 1), "VALID", dimension_numbers=dn)
        y = y + b.reshape(1, -1, 1, 1)
        y = lax.reduce_window(y, -jnp.inf, lax.max, (1, 1, 2, 2), (1, 1, 2, 2), "VALID")
        return jnp.maximum(y, 0.0)

    y = conv_block(x, c1w, c1b)
    y = conv_block(y, c2w, c2b)
    y = y.reshape(y.shape[0], -1)
    h = jnp.maximum(y @ f1w.T + f1b, 0.0)
    logits = h @ f2w.T + f2b
    return jax.nn.log_softmax(logits, axis=-1)


if __name__ == "__main__":
    key = jax.random.PRNGKey(0)
    ks = jax.random.split(key, 9)

    def uinit(k, shape, fan_in):
        bound = 1.0 / math.sqrt(fan_in)
        return jax.random.uniform(k, shape, jnp.float32, -bound, bound)

    num_filter_conv1, num_filter_conv2, num_hidden_node = 10, 20, 50
    cnn_output = num_filter_conv2 * 16   # 320

    params = (
        uinit(ks[0], (num_filter_conv1, 1, 5, 5), 1 * 5 * 5),              # conv1.weight
        uinit(ks[1], (num_filter_conv1,), 1 * 5 * 5),                      # conv1.bias
        uinit(ks[2], (num_filter_conv2, num_filter_conv1, 5, 5),
              num_filter_conv1 * 5 * 5),                                   # conv2.weight
        uinit(ks[3], (num_filter_conv2,), num_filter_conv1 * 5 * 5),       # conv2.bias
        uinit(ks[4], (num_hidden_node, cnn_output), cnn_output),           # fc1.weight
        uinit(ks[5], (num_hidden_node,), cnn_output),                      # fc1.bias
        uinit(ks[6], (10, num_hidden_node), num_hidden_node),              # fc2.weight
        uinit(ks[7], (10,), num_hidden_node),                              # fc2.bias
    )

    # MNIST-style input implied by cnn_output = 20 * 4 * 4: (B, 1, 28, 28)
    x = jax.random.normal(ks[8], (2, 1, 28, 28), jnp.float32)

    out = jax.jit(my_network_forward)(x, params)
    out = jax.block_until_ready(out)

    ref = reference_forward(x, params)
    np.testing.assert_allclose(np.asarray(out), np.asarray(ref), atol=1e-4, rtol=1e-4)
    assert out.shape == (2, 10)
    print("KERNEL_OK")
</pallas_src>

<mosaic_0001>
module attributes {stable_mosaic.version = 11 : i64} {
  func.func @_fused_forward_kernel(%arg0: i32, %arg1: memref<2x28x28xf32, #tpu.memory_space<vmem>>, %arg2: memref<5x28x240xf32, #tpu.memory_space<vmem>>, %arg3: memref<1x240xf32, #tpu.memory_space<vmem>>, %arg4: memref<5x120x160xf32, #tpu.memory_space<vmem>>, %arg5: memref<1x160xf32, #tpu.memory_space<vmem>>, %arg6: memref<320x50xf32, #tpu.memory_space<vmem>>, %arg7: memref<1x50xf32, #tpu.memory_space<vmem>>, %arg8: memref<50x10xf32, #tpu.memory_space<vmem>>, %arg9: memref<1x10xf32, #tpu.memory_space<vmem>>, %arg10: memref<2x10xf32, #tpu.memory_space<vmem>>) attributes {dimension_semantics = [#tpu.dimension_semantics<parallel>], iteration_bounds = array<i64: 1>, scalar_prefetch = 0 : i64, scratch_operands = 0 : i64, tpu.core_type = #tpu.core_type<tc>, window_params = [{transform_indices = @transform_0, window_bounds = array<i64: 2, 28, 28>}, {pipeline_mode = #tpu.pipeline_mode<synchronous>, transform_indices = @transform_1, window_bounds = array<i64: 5, 28, 240>}, {pipeline_mode = #tpu.pipeline_mode<synchronous>, transform_indices = @transform_2, window_bounds = array<i64: 1, 240>}, {pipeline_mode = #tpu.pipeline_mode<synchronous>, transform_indices = @transform_3, window_bounds = array<i64: 5, 120, 160>}, {pipeline_mode = #tpu.pipeline_mode<synchronous>, transform_indices = @transform_4, window_bounds = array<i64: 1, 160>}, {pipeline_mode = #tpu.pipeline_mode<synchronous>, transform_indices = @transform_5, window_bounds = array<i64: 320, 50>}, {pipeline_mode = #tpu.pipeline_mode<synchronous>, transform_indices = @transform_6, window_bounds = array<i64: 1, 50>}, {pipeline_mode = #tpu.pipeline_mode<synchronous>, transform_indices = @transform_7, window_bounds = array<i64: 50, 10>}, {pipeline_mode = #tpu.pipeline_mode<synchronous>, transform_indices = @transform_8, window_bounds = array<i64: 1, 10>}, {transform_indices = @transform_9, window_bounds = array<i64: 2, 10>}]} {
    %c0 = arith.constant 0 : index
    %c0_0 = arith.constant 0 : index
    %c0_1 = arith.constant 0 : index
    %0 = vector.load %arg1[%c0, %c0_0, %c0_1] : memref<2x28x28xf32, #tpu.memory_space<vmem>>, vector<2x28x28xf32>
    %1 = vector.extract_strided_slice %0 {offsets = [0, 0, 0], sizes = [2, 24, 28], strides = [1, 1, 1]} : vector<2x28x28xf32> to vector<2x24x28xf32>
    %2 = vector.shape_cast %1 : vector<2x24x28xf32> to vector<48x28xf32>
    %c0_2 = arith.constant 0 : index
    %c0_3 = arith.constant 0 : index
    %c0_4 = arith.constant 0 : index
    %3 = vector.load %arg2[%c0_2, %c0_3, %c0_4] : memref<5x28x240xf32, #tpu.memory_space<vmem>>, vector<1x28x240xf32>
    %4 = vector.shape_cast %3 : vector<1x28x240xf32> to vector<28x240xf32>
    %cst = arith.constant dense<0.000000e+00> : vector<48x240xf32>
    %5 = tpu.matmul %2, %4, %cst {dimension_numbers = #tpu.dot_dimension_numbers<[1], [0], [0], [1], [0, 0, 1, 1], [], []>} : vector<48x28xf32>, vector<28x240xf32>, vector<48x240xf32> -> vector<48x240xf32>
    %6 = vector.extract_strided_slice %0 {offsets = [0, 1, 0], sizes = [2, 24, 28], strides = [1, 1, 1]} : vector<2x28x28xf32> to vector<2x24x28xf32>
    %7 = vector.shape_cast %6 : vector<2x24x28xf32> to vector<48x28xf32>
    %c1 = arith.constant 1 : index
    %c0_5 = arith.constant 0 : index
    %c0_6 = arith.constant 0 : index
    %8 = vector.load %arg2[%c1, %c0_5, %c0_6] : memref<5x28x240xf32, #tpu.memory_space<vmem>>, vector<1x28x240xf32>
    %9 = vector.shape_cast %8 : vector<1x28x240xf32> to vector<28x240xf32>
    %cst_7 = arith.constant dense<0.000000e+00> : vector<48x240xf32>
    %10 = tpu.matmul %7, %9, %cst_7 {dimension_numbers = #tpu.dot_dimension_numbers<[1], [0], [0], [1], [0, 0, 1, 1], [], []>} : vector<48x28xf32>, vector<28x240xf32>, vector<48x240xf32> -> vector<48x240xf32>
    %11 = arith.addf %5, %10 : vector<48x240xf32>
    %12 = vector.extract_strided_slice %0 {offsets = [0, 2, 0], sizes = [2, 24, 28], strides = [1, 1, 1]} : vector<2x28x28xf32> to vector<2x24x28xf32>
    %13 = vector.shape_cast %12 : vector<2x24x28xf32> to vector<48x28xf32>
    %c2 = arith.constant 2 : index
    %c0_8 = arith.constant 0 : index
    %c0_9 = arith.constant 0 : index
    %14 = vector.load %arg2[%c2, %c0_8, %c0_9] : memref<5x28x240xf32, #tpu.memory_space<vmem>>, vector<1x28x240xf32>
    %15 = vector.shape_cast %14 : vector<1x28x240xf32> to vector<28x240xf32>
    %cst_10 = arith.constant dense<0.000000e+00> : vector<48x240xf32>
    %16 = tpu.matmul %13, %15, %cst_10 {dimension_numbers = #tpu.dot_dimension_numbers<[1], [0], [0], [1], [0, 0, 1, 1], [], []>} : vector<48x28xf32>, vector<28x240xf32>, vector<48x240xf32> -> vector<48x240xf32>
    %17 = arith.addf %11, %16 : vector<48x240xf32>
    %18 = vector.extract_strided_slice %0 {offsets = [0, 3, 0], sizes = [2, 24, 28], strides = [1, 1, 1]} : vector<2x28x28xf32> to vector<2x24x28xf32>
    %19 = vector.shape_cast %18 : vector<2x24x28xf32> to vector<48x28xf32>
    %c3 = arith.constant 3 : index
    %c0_11 = arith.constant 0 : index
    %c0_12 = arith.constant 0 : index
    %20 = vector.load %arg2[%c3, %c0_11, %c0_12] : memref<5x28x240xf32, #tpu.memory_space<vmem>>, vector<1x28x240xf32>
    %21 = vector.shape_cast %20 : vector<1x28x240xf32> to vector<28x240xf32>
    %cst_13 = arith.constant dense<0.000000e+00> : vector<48x240xf32>
    %22 = tpu.matmul %19, %21, %cst_13 {dimension_numbers = #tpu.dot_dimension_numbers<[1], [0], [0], [1], [0, 0, 1, 1], [], []>} : vector<48x28xf32>, vector<28x240xf32>, vector<48x240xf32> -> vector<48x240xf32>
    %23 = arith.addf %17, %22 : vector<48x240xf32>
    %24 = vector.extract_strided_slice %0 {offsets = [0, 4, 0], sizes = [2, 24, 28], strides = [1, 1, 1]} : vector<2x28x28xf32> to vector<2x24x28xf32>
    %25 = vector.shape_cast %24 : vector<2x24x28xf32> to vector<48x28xf32>
    %c4 = arith.constant 4 : index
    %c0_14 = arith.constant 0 : index
    %c0_15 = arith.constant 0 : index
    %26 = vector.load %arg2[%c4, %c0_14, %c0_15] : memref<5x28x240xf32, #tpu.memory_space<vmem>>, vector<1x28x240xf32>
    %27 = vector.shape_cast %26 : vector<1x28x240xf32> to vector<28x240xf32>
    %cst_16 = arith.constant dense<0.000000e+00> : vector<48x240xf32>
    %28 = tpu.matmul %25, %27, %cst_16 {dimension_numbers = #tpu.dot_dimension_numbers<[1], [0], [0], [1], [0, 0, 1, 1], [], []>} : vector<48x28xf32>, vector<28x240xf32>, vector<48x240xf32> -> vector<48x240xf32>
    %29 = arith.addf %23, %28 : vector<48x240xf32>
    %c0_17 = arith.constant 0 : index
    %c0_18 = arith.constant 0 : index
    %30 = vector.load %arg3[%c0_17, %c0_18] : memref<1x240xf32, #tpu.memory_space<vmem>>, vector<1x240xf32>
    %31 = vector.broadcast %30 : vector<1x240xf32> to vector<48x240xf32>
    %32 = arith.addf %29, %31 : vector<48x240xf32>
    %33 = vector.extract_strided_slice %32 {offsets = [0, 0], sizes = [48, 120], strides = [1, 1]} : vector<48x240xf32> to vector<48x120xf32>
    %34 = vector.extract_strided_slice %32 {offsets = [0, 120], sizes = [48, 120], strides = [1, 1]} : vector<48x240xf32> to vector<48x120xf32>
    %35 = arith.maximumf %33, %34 : vector<48x120xf32>
    %36 = vector.shape_cast %35 : vector<48x120xf32> to vector<2x12x2x120xf32>
    %37 = vector.extract_strided_slice %36 {offsets = [0, 0, 0, 0], sizes = [2, 12, 1, 120], strides = [1, 1, 1, 1]} : vector<2x12x2x120xf32> to vector<2x12x1x120xf32>
    %38 = vector.shape_cast %37 : vector<2x12x1x120xf32> to vector<2x12x120xf32>
    %39 = vector.extract_strided_slice %36 {offsets = [0, 0, 1, 0], sizes = [2, 12, 1, 120], strides = [1, 1, 1, 1]} : vector<2x12x2x120xf32> to vector<2x12x1x120xf32>
    %40 = vector.shape_cast %39 : vector<2x12x1x120xf32> to vector<2x12x120xf32>
    %41 = arith.maximumf %38, %40 : vector<2x12x120xf32>
    %cst_19 = arith.constant 0.000000e+00 : f32
    %42 = vector.broadcast %cst_19 : f32 to vector<2x12x120xf32>
    %43 = arith.maximumf %41, %42 : vector<2x12x120xf32>
    %44 = vector.extract_strided_slice %43 {offsets = [0, 0, 0], sizes = [2, 8, 120], strides = [1, 1, 1]} : vector<2x12x120xf32> to vector<2x8x120xf32>
    %45 = vector.shape_cast %44 : vector<2x8x120xf32> to vector<16x120xf32>
    %c0_20 = arith.constant 0 : index
    %c0_21 = arith.constant 0 : index
    %c0_22 = arith.constant 0 : index
    %46 = vector.load %arg4[%c0_20, %c0_21, %c0_22] : memref<5x120x160xf32, #tpu.memory_space<vmem>>, vector<1x120x160xf32>
    %47 = vector.shape_cast %46 : vector<1x120x160xf32> to vector<120x160xf32>
    %cst_23 = arith.constant dense<0.000000e+00> : vector<16x160xf32>
    %48 = tpu.matmul %45, %47, %cst_23 {dimension_numbers = #tpu.dot_dimension_numbers<[1], [0], [0], [1], [0, 0, 1, 1], [], []>} : vector<16x120xf32>, vector<120x160xf32>, vector<16x160xf32> -> vector<16x160xf32>
    %49 = vector.extract_strided_slice %43 {offsets = [0, 1, 0], sizes = [2, 8, 120], strides = [1, 1, 1]} : vector<2x12x120xf32> to vector<2x8x120xf32>
    %50 = vector.shape_cast %49 : vector<2x8x120xf32> to vector<16x120xf32>
    %c1_24 = arith.constant 1 : index
    %c0_25 = arith.constant 0 : index
    %c0_26 = arith.constant 0 : index
    %51 = vector.load %arg4[%c1_24, %c0_25, %c0_26] : memref<5x120x160xf32, #tpu.memory_space<vmem>>, vector<1x120x160xf32>
    %52 = vector.shape_cast %51 : vector<1x120x160xf32> to vector<120x160xf32>
    %cst_27 = arith.constant dense<0.000000e+00> : vector<16x160xf32>
    %53 = tpu.matmul %50, %52, %cst_27 {dimension_numbers = #tpu.dot_dimension_numbers<[1], [0], [0], [1], [0, 0, 1, 1], [], []>} : vector<16x120xf32>, vector<120x160xf32>, vector<16x160xf32> -> vector<16x160xf32>
    %54 = arith.addf %48, %53 : vector<16x160xf32>
    %55 = vector.extract_strided_slice %43 {offsets = [0, 2, 0], sizes = [2, 8, 120], strides = [1, 1, 1]} : vector<2x12x120xf32> to vector<2x8x120xf32>
    %56 = vector.shape_cast %55 : vector<2x8x120xf32> to vector<16x120xf32>
    %c2_28 = arith.constant 2 : index
    %c0_29 = arith.constant 0 : index
    %c0_30 = arith.constant 0 : index
    %57 = vector.load %arg4[%c2_28, %c0_29, %c0_30] : memref<5x120x160xf32, #tpu.memory_space<vmem>>, vector<1x120x160xf32>
    %58 = vector.shape_cast %57 : vector<1x120x160xf32> to vector<120x160xf32>
    %cst_31 = arith.constant dense<0.000000e+00> : vector<16x160xf32>
    %59 = tpu.matmul %56, %58, %cst_31 {dimension_numbers = #tpu.dot_dimension_numbers<[1], [0], [0], [1], [0, 0, 1, 1], [], []>} : vector<16x120xf32>, vector<120x160xf32>, vector<16x160xf32> -> vector<16x160xf32>
    %60 = arith.addf %54, %59 : vector<16x160xf32>
    %61 = vector.extract_strided_slice %43 {offsets = [0, 3, 0], sizes = [2, 8, 120], strides = [1, 1, 1]} : vector<2x12x120xf32> to vector<2x8x120xf32>
    %62 = vector.shape_cast %61 : vector<2x8x120xf32> to vector<16x120xf32>
    %c3_32 = arith.constant 3 : index
    %c0_33 = arith.constant 0 : index
    %c0_34 = arith.constant 0 : index
    %63 = vector.load %arg4[%c3_32, %c0_33, %c0_34] : memref<5x120x160xf32, #tpu.memory_space<vmem>>, vector<1x120x160xf32>
    %64 = vector.shape_cast %63 : vector<1x120x160xf32> to vector<120x160xf32>
    %cst_35 = arith.constant dense<0.000000e+00> : vector<16x160xf32>
    %65 = tpu.matmul %62, %64, %cst_35 {dimension_numbers = #tpu.dot_dimension_numbers<[1], [0], [0], [1], [0, 0, 1, 1], [], []>} : vector<16x120xf32>, vector<120x160xf32>, vector<16x160xf32> -> vector<16x160xf32>
    %66 = arith.addf %60, %65 : vector<16x160xf32>
    %67 = vector.extract_strided_slice %43 {offsets = [0, 4, 0], sizes = [2, 8, 120], strides = [1, 1, 1]} : vector<2x12x120xf32> to vector<2x8x120xf32>
    %68 = vector.shape_cast %67 : vector<2x8x120xf32> to vector<16x120xf32>
    %c4_36 = arith.constant 4 : index
    %c0_37 = arith.constant 0 : index
    %c0_38 = arith.constant 0 : index
    %69 = vector.load %arg4[%c4_36, %c0_37, %c0_38] : memref<5x120x160xf32, #tpu.memory_space<vmem>>, vector<1x120x160xf32>
    %70 = vector.shape_cast %69 : vector<1x120x160xf32> to vector<120x160xf32>
    %cst_39 = arith.constant dense<0.000000e+00> : vector<16x160xf32>
    %71 = tpu.matmul %68, %70, %cst_39 {dimension_numbers = #tpu.dot_dimension_numbers<[1], [0], [0], [1], [0, 0, 1, 1], [], []>} : vector<16x120xf32>, vector<120x160xf32>, vector<16x160xf32> -> vector<16x160xf32>
    %72 = arith.addf %66, %71 : vector<16x160xf32>
    %c0_40 = arith.constant 0 : index
    %c0_41 = arith.constant 0 : index
    %73 = vector.load %arg5[%c0_40, %c0_41] : memref<1x160xf32, #tpu.memory_space<vmem>>, vector<1x160xf32>
    %74 = vector.broadcast %73 : vector<1x160xf32> to vector<16x160xf32>
    %75 = arith.addf %72, %74 : vector<16x160xf32>
    %76 = vector.extract_strided_slice %75 {offsets = [0, 0], sizes = [16, 80], strides = [1, 1]} : vector<16x160xf32> to vector<16x80xf32>
    %77 = vector.extract_strided_slice %75 {offsets = [0, 80], sizes = [16, 80], strides = [1, 1]} : vector<16x160xf32> to vector<16x80xf32>
    %78 = arith.maximumf %76, %77 : vector<16x80xf32>
    %79 = vector.shape_cast %78 : vector<16x80xf32> to vector<2x4x2x80xf32>
    %80 = vector.extract_strided_slice %79 {offsets = [0, 0, 0, 0], sizes = [2, 4, 1, 80], strides = [1, 1, 1, 1]} : vector<2x4x2x80xf32> to vector<2x4x1x80xf32>
    %81 = vector.shape_cast %80 : vector<2x4x1x80xf32> to vector<2x4x80xf32>
    %82 = vector.extract_strided_slice %79 {offsets = [0, 0, 1, 0], sizes = [2, 4, 1, 80], strides = [1, 1, 1, 1]} : vector<2x4x2x80xf32> to vector<2x4x1x80xf32>
    %83 = vector.shape_cast %82 : vector<2x4x1x80xf32> to vector<2x4x80xf32>
    %84 = arith.maximumf %81, %83 : vector<2x4x80xf32>
    %cst_42 = arith.constant 0.000000e+00 : f32
    %85 = vector.broadcast %cst_42 : f32 to vector<2x4x80xf32>
    %86 = arith.maximumf %84, %85 : vector<2x4x80xf32>
    %87 = vector.shape_cast %86 : vector<2x4x80xf32> to vector<2x320xf32>
    %c0_43 = arith.constant 0 : index
    %c0_44 = arith.constant 0 : index
    %88 = vector.load %arg6[%c0_43, %c0_44] : memref<320x50xf32, #tpu.memory_space<vmem>>, vector<320x50xf32>
    %cst_45 = arith.constant dense<0.000000e+00> : vector<2x50xf32>
    %89 = tpu.matmul %87, %88, %cst_45 {dimension_numbers = #tpu.dot_dimension_numbers<[1], [0], [0], [1], [0, 0, 1, 1], [], []>} : vector<2x320xf32>, vector<320x50xf32>, vector<2x50xf32> -> vector<2x50xf32>
    %c0_46 = arith.constant 0 : index
    %c0_47 = arith.constant 0 : index
    %90 = vector.load %arg7[%c0_46, %c0_47] : memref<1x50xf32, #tpu.memory_space<vmem>>, vector<1x50xf32>
    %91 = vector.broadcast %90 : vector<1x50xf32> to vector<2x50xf32>
    %92 = arith.addf %89, %91 : vector<2x50xf32>
    %cst_48 = arith.constant 0.000000e+00 : f32
    %93 = vector.broadcast %cst_48 : f32 to vector<2x50xf32>
    %94 = arith.maximumf %92, %93 : vector<2x50xf32>
    %c0_49 = arith.constant 0 : index
    %c0_50 = arith.constant 0 : index
    %95 = vector.load %arg8[%c0_49, %c0_50] : memref<50x10xf32, #tpu.memory_space<vmem>>, vector<50x10xf32>
    %cst_51 = arith.constant dense<0.000000e+00> : vector<2x10xf32>
    %96 = tpu.matmul %94, %95, %cst_51 {dimension_numbers = #tpu.dot_dimension_numbers<[1], [0], [0], [1], [0, 0, 1, 1], [], []>} : vector<2x50xf32>, vector<50x10xf32>, vector<2x10xf32> -> vector<2x10xf32>
    %c0_52 = arith.constant 0 : index
    %c0_53 = arith.constant 0 : index
    %97 = vector.load %arg9[%c0_52, %c0_53] : memref<1x10xf32, #tpu.memory_space<vmem>>, vector<1x10xf32>
    %98 = vector.broadcast %97 : vector<1x10xf32> to vector<2x10xf32>
    %99 = arith.addf %96, %98 : vector<2x10xf32>
    %cst_54 = arith.constant dense<0xFF800000> : vector<2xf32>
    %100 = vector.multi_reduction <maximumf>, %99, %cst_54 [1] : vector<2x10xf32> to vector<2xf32>
    %101 = vector.shape_cast %100 : vector<2xf32> to vector<2x1xf32>
    %102 = vector.broadcast %101 : vector<2x1xf32> to vector<2x10xf32>
    %103 = arith.subf %99, %102 : vector<2x10xf32>
    %104 = math.exp %103 : vector<2x10xf32>
    %cst_55 = arith.constant dense<0.000000e+00> : vector<2xf32>
    %105 = vector.multi_reduction <add>, %104, %cst_55 [1] : vector<2x10xf32> to vector<2xf32>
    %106 = vector.shape_cast %105 : vector<2xf32> to vector<2x1xf32>
    %107 = math.log %106 : vector<2x1xf32>
    %108 = vector.broadcast %107 : vector<2x1xf32> to vector<2x10xf32>
    %109 = arith.subf %103, %108 : vector<2x10xf32>
    %c0_56 = arith.constant 0 : index
    %c0_57 = arith.constant 0 : index
    %110 = vector.load %arg10[%c0_56, %c0_57] : memref<2x10xf32, #tpu.memory_space<vmem>>, vector<2x10xf32>
    tpu.vector_store %arg10[%c0_56, %c0_57], %109 {strides = array<i32>} : memref<2x10xf32, #tpu.memory_space<vmem>>, vector<2x10xf32>,
    return
  }
  func.func @transform_0(%arg0: i32) -> (i32, i32, i32) {
    %c0_i32 = arith.constant 0 : i32
    %c0_i32_0 = arith.constant 0 : i32
    %c0_i32_1 = arith.constant 0 : i32
    return %arg0, %c0_i32, %c0_i32_0 : i32, i32, i32
  }
  func.func @transform_1(%arg0: i32) -> (i32, i32, i32) {
    %c0_i32 = arith.constant 0 : i32
    %c0_i32_0 = arith.constant 0 : i32
    %c0_i32_1 = arith.constant 0 : i32
    %c0_i32_2 = arith.constant 0 : i32
    return %c0_i32, %c0_i32_0, %c0_i32_1 : i32, i32, i32
  }
  func.func @transform_2(%arg0: i32) -> (i32, i32) {
    %c0_i32 = arith.constant 0 : i32
    %c0_i32_0 = arith.constant 0 : i32
    %c0_i32_1 = arith.constant 0 : i32
    return %c0_i32, %c0_i32_0 : i32, i32
  }
  func.func @transform_3(%arg0: i32) -> (i32, i32, i32) {
    %c0_i32 = arith.constant 0 : i32
    %c0_i32_0 = arith.constant 0 : i32
    %c0_i32_1 = arith.constant 0 : i32
    %c0_i32_2 = arith.constant 0 : i32
    return %c0_i32, %c0_i32_0, %c0_i32_1 : i32, i32, i32
  }
  func.func @transform_4(%arg0: i32) -> (i32, i32) {
    %c0_i32 = arith.constant 0 : i32
    %c0_i32_0 = arith.constant 0 : i32
    %c0_i32_1 = arith.constant 0 : i32
    return %c0_i32, %c0_i32_0 : i32, i32
  }
  func.func @transform_5(%arg0: i32) -> (i32, i32) {
    %c0_i32 = arith.constant 0 : i32
    %c0_i32_0 = arith.constant 0 : i32
    %c0_i32_1 = arith.constant 0 : i32
    return %c0_i32, %c0_i32_0 : i32, i32
  }
  func.func @transform_6(%arg0: i32) -> (i32, i32) {
    %c0_i32 = arith.constant 0 : i32
    %c0_i32_0 = arith.constant 0 : i32
    %c0_i32_1 = arith.constant 0 : i32
    return %c0_i32, %c0_i32_0 : i32, i32
  }
  func.func @transform_7(%arg0: i32) -> (i32, i32) {
    %c0_i32 = arith.constant 0 : i32
    %c0_i32_0 = arith.constant 0 : i32
    %c0_i32_1 = arith.constant 0 : i32
    return %c0_i32, %c0_i32_0 : i32, i32
  }
  func.func @transform_8(%arg0: i32) -> (i32, i32) {
    %c0_i32 = arith.constant 0 : i32
    %c0_i32_0 = arith.constant 0 : i32
    %c0_i32_1 = arith.constant 0 : i32
    return %c0_i32, %c0_i32_0 : i32, i32
  }
  func.func @transform_9(%arg0: i32) -> (i32, i32) {
    %c0_i32 = arith.constant 0 : i32
    %c0_i32_0 = arith.constant 0 : i32
    return %arg0, %c0_i32 : i32, i32
  }
}

</mosaic_0001>

<llo_original>
// kernel: tile.13
$region0: #{tile.13}
  #allocation0 [shape = 's32[1]{0}', space=sflag, size = 0x4, scoped, tag = 'scoped memory for tile.13']
  %s0 = inlined_call_operand.vmem [shape: f32[10], index: 0, kind: input, shape index: {}]
  %s1 = inlined_call_operand.vmem [shape: f32[24,10], index: 1, kind: output, shape index: {}]
  // Predicated region
  $region2: #{tile.13} parent=0 // pred_check
    _
  $region3: #{tile.13} parent=0 // pred_check_branch
    %3 = sbr.rel (0) target = $region5
  $region4: #{tile.13} parent=0 // pred_region
    _
  $region5: #{tile.13} parent=0 // pred_fallthru
    _
  %v4 = vld [vmem:[%s0] ss:$0 sm:$0xff]
  %5 = vst [vmem:[%s1] sm:$0xff] %v4
  %s6 = scalar_lea.vmem %s1, 8
  %7 = vst [vmem:[%s6] sm:$0xff] %v4
  %s8 = scalar_lea.vmem %s1, 16
  %9 = vst [vmem:[%s8] sm:$0xff] %v4

// kernel: tile.14
$region0: #{tile.14}
  %s0 = inlined_call_operand.vmem [shape: f32[24,10], index: 0, kind: input, shape index: {}]
  %s1 = inlined_call_operand.vmem [shape: f32[1,240], index: 1, kind: output, shape index: {}]
  $region1: #{tile.14} parent=0
    #allocation0 [shape = 'u8[8192]{0}', space=vmem, size = 0x2000, scoped, tag = 'scoped mem for output reshape']
    %v2 = vld [vmem:[%s0] sm:$0x1]
    %vm3 = vcmask 80896
    %4 = vst.msk [vmem:[#allocation0] sm:$0x1] %vm3, %v2
    %s5 = scalar_lea.vmem %s0, 12
    %v6 = vld [vmem:[%s5] sm:$0x1]
    %s7 = scalar_lea.vmem %s0, 12
    %v8 = vld [vmem:[%s7] sm:$0x1]
    %vm9 = vcmask 64512
    %v10 = vsel %vm9, %v8, %v6
    %11 = vrot.lane.b32.xlu0 %v10, 120
    %v12 = vpop.permute.xlu0 %11
    %vm13 = vcmask 15360
    %s14 = scalar_lea.vmem [#allocation0], 8
    %15 = vst.msk [vmem:[%s14] sm:$0x1] %vm13, %v12
    %vm16 = vcmask 1048512
    %17 = vst.msk [vmem:[#allocation0] sm:$0x1] %vm16, %v12
    %s18 = scalar_lea.vmem %s0, 11
    %v19 = vld [vmem:[%s18] sm:$0x1]
    %20 = vrot.lane.b32.xlu0 %v19, 110
    %v21 = vpop.permute.xlu0 %20
    %vm22 = vcmask 982896
    %23 = vst.msk [vmem:[#allocation0] sm:$0x1] %vm22, %v21
    %s24 = scalar_lea.vmem %s0, 23
    %v25 = vld [vmem:[%s24] sm:$0x1]
    %26 = vrot.lane.b32.xlu0 %v25, 102
    %v27 = vpop.permute.xlu0 %26
    %vm28 = vcmask 917296
    %s29 = scalar_lea.vmem [#allocation0], 8
    %30 = vst.msk [vmem:[%s29] sm:$0x1] %vm28, %v27
    %s31 = scalar_lea.vmem %s0, 10
    %v32 = vld [vmem:[%s31] sm:$0x1]
    %33 = vrot.lane.b32.xlu0 %v32, 100
    %v34 = vpop.permute.xlu0 %33
    %vm35 = vcmask 900896
    %36 = vst.msk [vmem:[#allocation0] sm:$0x1] %vm35, %v34
    %s37 = scalar_lea.vmem %s0, 22
    %v38 = vld [vmem:[%s37] sm:$0x1]
    %39 = vrot.lane.b32.xlu0 %v38, 92
    %v40 = vpop.permute.xlu0 %39
    %vm41 = vcmask 835296
    %s42 = scalar_lea.vmem [#allocation0], 8
    %43 = vst.msk [vmem:[%s42] sm:$0x1] %vm41, %v40
    %s44 = scalar_lea.vmem %s0, 9
    %v45 = vld [vmem:[%s44] sm:$0x1]
    %46 = vrot.lane.b32.xlu0 %v45, 90
    %v47 = vpop.permute.xlu0 %46
    %vm48 = vcmask 818896
    %49 = vst.msk [vmem:[#allocation0] sm:$0x1] %vm48, %v47
    %s50 = scalar_lea.vmem %s0, 21
    %v51 = vld [vmem:[%s50] sm:$0x1]
    %52 = vrot.lane.b32.xlu0 %v51, 82
    %v53 = vpop.permute.xlu0 %52
    %vm54 = vcmask 753296
    %s55 = scalar_lea.vmem [#allocation0], 8
    %56 = vst.msk [vmem:[%s55] sm:$0x1] %vm54, %v53
    %s57 = scalar_lea.vmem %s0, 8
    %v58 = vld [vmem:[%s57] sm:$0x1]
    %59 = vrot.lane.b32.xlu0 %v58, 80
    %v60 = vpop.permute.xlu0 %59
    %vm61 = vcmask 736896
    %62 = vst.msk [vmem:[#allocation0] sm:$0x1] %vm61, %v60
    %s63 = scalar_lea.vmem %s0, 20
    %v64 = vld [vmem:[%s63] sm:$0x1]
    %65 = vrot.lane.b32.xlu0 %v64, 72
    %v66 = vpop.permute.xlu0 %65
    %vm67 = vcmask 671296
    %s68 = scalar_lea.vmem [#allocation0], 8
    %69 = vst.msk [vmem:[%s68] sm:$0x1] %vm67, %v66
    %s70 = scalar_lea.vmem %s0, 7
    %v71 = vld [vmem:[%s70] sm:$0x1]
    %72 = vrot.lane.b32.xlu0 %v71, 70
    %v73 = vpop.permute.xlu0 %72
    %vm74 = vcmask 654896
    %75 = vst.msk [vmem:[#allocation0] sm:$0x1] %vm74, %v73
    %s76 = scalar_lea.vmem %s0, 19
    %v77 = vld [vmem:[%s76] sm:$0x1]
    %78 = vrot.lane.b32.xlu0 %v77, 62
    %v79 = vpop.permute.xlu0 %78
    %vm80 = vcmask 589296
    %s81 = scalar_lea.vmem [#allocation0], 8
    %82 = vst.msk [vmem:[%s81] sm:$0x1] %vm80, %v79
    %s83 = scalar_lea.vmem %s0, 6
    %v84 = vld [vmem:[%s83] sm:$0x1]
    %85 = vrot.lane.b32.xlu0 %v84, 60
    %v86 = vpop.permute.xlu0 %85
    %vm87 = vcmask 572896
    %88 = vst.msk [vmem:[#allocation0] sm:$0x1] %vm87, %v86
    %s89 = scalar_lea.vmem %s0, 18
    %v90 = vld [vmem:[%s89] sm:$0x1]
    %91 = vrot.lane.b32.xlu0 %v90, 52
    %v92 = vpop.permute.xlu0 %91
    %vm93 = vcmask 507296
    %s94 = scalar_lea.vmem [#allocation0], 8
    %95 = vst.msk [vmem:[%s94] sm:$0x1] %vm93, %v92
    %s96 = scalar_lea.vmem %s0, 5
    %v97 = vld [vmem:[%s96] sm:$0x1]
    %98 = vrot.lane.b32.xlu0 %v97, 50
    %v99 = vpop.permute.xlu0 %98
    %vm100 = vcmask 490896
    %101 = vst.msk [vmem:[#allocation0] sm:$0x1] %vm100, %v99
    %s102 = scalar_lea.vmem %s0, 17
    %v103 = vld [vmem:[%s102] sm:$0x1]
    %104 = vrot.lane.b32.xlu0 %v103, 42
    %v105 = vpop.permute.xlu0 %104
    %vm106 = vcmask 425296
    %s107 = scalar_lea.vmem [#allocation0], 8
    %108 = vst.msk [vmem:[%s107] sm:$0x1] %vm106, %v105
    %s109 = scalar_lea.vmem %s0, 4
    %v110 = vld [vmem:[%s109] sm:$0x1]
    %111 = vrot.lane.b32.xlu0 %v110, 40
    %v112 = vpop.permute.xlu0 %111
    %vm113 = vcmask 408896
    %114 = vst.msk [vmem:[#allocation0] sm:$0x1] %vm113, %v112
    %s115 = scalar_lea.vmem %s0, 16
    %v116 = vld [vmem:[%s115] sm:$0x1]
    %117 = vrot.lane.b32.xlu0 %v116, 32
    %v118 = vpop.permute.xlu0 %117
    %vm119 = vcmask 343296
    %s120 = scalar_lea.vmem [#allocation0], 8
    %121 = vst.msk [vmem:[%s120] sm:$0x1] %vm119, %v118
    %s122 = scalar_lea.vmem %s0, 3
    %v123 = vld [vmem:[%s122] sm:$0x1]
    %124 = vrot.lane.b32.xlu0 %v123, 30
    %v125 = vpop.permute.xlu0 %124
    %vm126 = vcmask 326896
    %127 = vst.msk [vmem:[#allocation0] sm:$0x1] %vm126, %v125
    %s128 = scalar_lea.vmem %s0, 15
    %v129 = vld [vmem:[%s128] sm:$0x1]
    %130 = vrot.lane.b32.xlu0 %v129, 22
    %v131 = vpop.permute.xlu0 %130
    %vm132 = vcmask 261296
    %s133 = scalar_lea.vmem [#allocation0], 8
    %134 = vst.msk [vmem:[%s133] sm:$0x1] %vm132, %v131
    %s135 = scalar_lea.vmem %s0, 2
    %v136 = vld [vmem:[%s135] sm:$0x1]
    %137 = vrot.lane.b32.xlu0 %v136, 20
    %v138 = vpop.permute.xlu0 %137
    %vm139 = vcmask 244896
    %140 = vst.msk [vmem:[#allocation0] sm:$0x1] %vm139, %v138
    %s141 = scalar_lea.vmem %s0, 14
    %v142 = vld [vmem:[%s141] sm:$0x1]
    %143 = vrot.lane.b32.xlu0 %v142, 12
    %v144 = vpop.permute.xlu0 %143
    %vm145 = vcmask 179296
    %s146 = scalar_lea.vmem [#allocation0], 8
    %147 = vst.msk [vmem:[%s146] sm:$0x1] %vm145, %v144
    %s148 = scalar_lea.vmem %s0, 1
    %v149 = vld [vmem:[%s148] sm:$0x1]
    %150 = vrot.lane.b32.xlu0 %v149, 10
    %v151 = vpop.permute.xlu0 %150
    %vm152 = vcmask 162896
    %153 = vst.msk [vmem:[#allocation0] sm:$0x1] %vm152, %v151
    %s154 = scalar_lea.vmem %s0, 13
    %v155 = vld [vmem:[%s154] sm:$0x1]
    %156 = vrot.lane.b32.xlu0 %v155, 2
    %v157 = vpop.permute.xlu0 %156
    %vm158 = vcmask 97296
    %s159 = scalar_lea.vmem [#allocation0], 8
    %160 = vst.msk [vmem:[%s159] sm:$0x1] %vm158, %v157
    %s162 = ssub.s32 2, 1
    %v163 = vld [vmem:[#allocation0] sm:%s162]
    %s165 = ssub.s32 2, 1
    %166 = vst [vmem:[%s1] sm:%s165] %v163
    %s167 = scalar_lea.vmem [#allocation0], 8
    %v168 = vld [vmem:[%s167] sm:%s162]
    %s170 = ssub.s32 2, 1
    %s171 = scalar_lea.vmem %s1, 1
    %172 = vst [vmem:[%s171] sm:%s170] %v168

// kernel: tile.18
$region0: #{tile.18}
  #allocation0 [shape = 's32[1]{0}', space=sflag, size = 0x4, scoped, tag = 'scoped memory for tile.18']
  %s0 = inlined_call_operand.vmem [shape: f32[20], index: 0, kind: input, shape index: {}]
  %s1 = inlined_call_operand.vmem [shape: f32[8,20], index: 1, kind: output, shape index: {}]
  // Predicated region
  $region2: #{tile.18} parent=0 // pred_check
    _
  $region3: #{tile.18} parent=0 // pred_check_branch
    %3 = sbr.rel (0) target = $region5
  $region4: #{tile.18} parent=0 // pred_region
    _
  $region5: #{tile.18} parent=0 // pred_fallthru
    _
  %v4 = vld [vmem:[%s0] ss:$0 sm:$0xff]
  %5 = vst [vmem:[%s1] sm:$0xff] %v4

// kernel: tile.19
$region0: #{tile.19}
  %s0 = inlined_call_operand.vmem [shape: f32[8,20], index: 0, kind: input, shape index: {}]
  %s1 = inlined_call_operand.vmem [shape: f32[1,160], index: 1, kind: output, shape index: {}]
  $region1: #{tile.19} parent=0
    #allocation0 [shape = 'u8[8192]{0}', space=vmem, size = 0x2000, scoped, tag = 'scoped mem for output reshape']
    %v2 = vld [vmem:[%s0] sm:$0x1]
    %vm3 = vcmask 162816
    %4 = vst.msk [vmem:[#allocation0] sm:$0x1] %vm3, %v2
    %s5 = scalar_lea.vmem %s0, 6
    %v6 = vld [vmem:[%s5] sm:$0x1]
    %s7 = scalar_lea.vmem %s0, 6
    %v8 = vld [vmem:[%s7] sm:$0x1]
    %vm9 = vcmask 64512
    %v10 = vsel %vm9, %v8, %v6
    %11 = vrot.lane.b32.xlu0 %v10, 120
    %v12 = vpop.permute.xlu0 %11
    %vm13 = vcmask 97280
    %s14 = scalar_lea.vmem [#allocation0], 8
    %15 = vst.msk [vmem:[%s14] sm:$0x1] %vm13, %v12
    %vm16 = vcmask 1048512
    %17 = vst.msk [vmem:[#allocation0] sm:$0x1] %vm16, %v12
    %s18 = scalar_lea.vmem %s0, 5
    %v19 = vld [vmem:[%s18] sm:$0x1]
    %20 = vrot.lane.b32.xlu0 %v19, 100
    %v21 = vpop.permute.xlu0 %20
    %vm22 = vcmask 982816
    %23 = vst.msk [vmem:[#allocation0] sm:$0x1] %vm22, %v21
    %s24 = scalar_lea.vmem %s0, 4
    %v25 = vld [vmem:[%s24] sm:$0x1]
    %26 = vrot.lane.b32.xlu0 %v25, 80
    %v27 = vpop.permute.xlu0 %26
    %vm28 = vcmask 818816
    %29 = vst.msk [vmem:[#allocation0] sm:$0x1] %vm28, %v27
    %s30 = scalar_lea.vmem %s0, 3
    %v31 = vld [vmem:[%s30] sm:$0x1]
    %32 = vrot.lane.b32.xlu0 %v31, 60
    %v33 = vpop.permute.xlu0 %32
    %vm34 = vcmask 654816
    %35 = vst.msk [vmem:[#allocation0] sm:$0x1] %vm34, %v33
    %s36 = scalar_lea.vmem %s0, 2
    %v37 = vld [vmem:[%s36] sm:$0x1]
    %38 = vrot.lane.b32.xlu0 %v37, 40
    %v39 = vpop.permute.xlu0 %38
    %vm40 = vcmask 490816
    %41 = vst.msk [vmem:[#allocation0] sm:$0x1] %vm40, %v39
    %s42 = scalar_lea.vmem %s0, 1
    %v43 = vld [vmem:[%s42] sm:$0x1]
    %44 = vrot.lane.b32.xlu0 %v43, 20
    %v45 = vpop.permute.xlu0 %44
    %vm46 = vcmask 326816
    %47 = vst.msk [vmem:[#allocation0] sm:$0x1] %vm46, %v45
    %s48 = scalar_lea.vmem %s0, 7
    %v49 = vld [vmem:[%s48] sm:$0x1]
    %50 = vrot.lane.b32.xlu0 %v49, 12
    %v51 = vpop.permute.xlu0 %50
    %vm52 = vcmask 261216
    %s53 = scalar_lea.vmem [#allocation0], 8
    %54 = vst.msk [vmem:[%s53] sm:$0x1] %vm52, %v51
    %s56 = ssub.s32 2, 1
    %v57 = vld [vmem:[#allocation0] sm:%s56]
    %s59 = ssub.s32 2, 1
    %60 = vst [vmem:[%s1] sm:%s59] %v57
    %s61 = scalar_lea.vmem [#allocation0], 8
    %v62 = vld [vmem:[%s61] sm:%s56]
    %s64 = ssub.s32 2, 1
    %s65 = scalar_lea.vmem %s1, 1
    %66 = vst [vmem:[%s65] sm:%s64] %v62

// kernel: my_network_forward.1
$region0: #{my_network_forward.1}
  #allocation0 [shape = 'u32[]', space=smem, size = 0x4, offset = 0x4, fixed_abs, tag = 'smem constant byte address 0x4 - core index']
  #allocation1 [shape = 'u32[72,128]{1,0:T(1,128)}', space=vmem, size = 0x9000, scoped, tag = 'internal scratch']
  %s0 = inlined_call_operand.vmem [shape: f32[2,28,28], index: 0, kind: input, shape index: {}]
  %s1 = inlined_call_operand.vmem [shape: f32[5,28,240], index: 1, kind: input, shape index: {}]
  %s2 = inlined_call_operand.vmem [shape: f32[1,240], index: 2, kind: input, shape index: {}]
  %s3 = inlined_call_operand.vmem [shape: f32[5,120,160], index: 3, kind: input, shape index: {}]
  %s4 = inlined_call_operand.vmem [shape: f32[1,160], index: 4, kind: input, shape index: {}]
  %s5 = inlined_call_operand.vmem [shape: f32[320,50], index: 5, kind: input, shape index: {}]
  %s6 = inlined_call_operand.vmem [shape: f32[1,50], index: 6, kind: input, shape index: {}]
  %s7 = inlined_call_operand.vmem [shape: f32[50,10], index: 7, kind: input, shape index: {}]
  %s8 = inlined_call_operand.vmem [shape: f32[1,10], index: 8, kind: input, shape index: {}]
  %s9 = inlined_call_operand.hbm [shape: f32[2,10], index: 9, kind: output, shape index: {}]
  %s10 = sld [smem:[#allocation0]]
  $region46: #{my_network_forward.1} parent=0
    _
  %s12 = ssub.s32 1, %s10
  %s13 = scalar_select 0, %s12, %s10
  $region1: #{my_network_forward.1} parent=0
    #allocation2 [shape = 'u8[1024]{0}', space=vmem, size = 0x400, scoped, tag = 'output window, operand 0, single buffered']
    #allocation3 [shape = 's32[1]{0}', space=sflag, size = 0x4, scoped, tag = 'scoped memory for my_network_forward.1']
    %14 = vsyncpa [#allocation3], 0
    // Predicated region
    $region2: #{my_network_forward.1} parent=1 // pred_check
      _
    $region3: #{my_network_forward.1} parent=1 // pred_check_branch
      %16 = sbr.rel (0) target = $region5
    $region4: #{my_network_forward.1} parent=1 // pred_region
      _
    $region5: #{my_network_forward.1} parent=1 // pred_fallthru
      _
    // Predicated region
    $region6: #{my_network_forward.1} parent=1 // pred_check
      _
    $region7: #{my_network_forward.1} parent=1 // pred_check_branch
      %18 = sbr.rel (0) target = $region9
    $region8: #{my_network_forward.1} parent=1 // pred_region
      _
    $region9: #{my_network_forward.1} parent=1 // pred_fallthru
      _
    // Predicated region
    $region10: #{my_network_forward.1} parent=1 // pred_check
      _
    $region11: #{my_network_forward.1} parent=1 // pred_check_branch
      %20 = sbr.rel (0) target = $region13
    $region12: #{my_network_forward.1} parent=1 // pred_region
      _
    $region13: #{my_network_forward.1} parent=1 // pred_fallthru
      _
    // Predicated region
    $region14: #{my_network_forward.1} parent=1 // pred_check
      _
    $region15: #{my_network_forward.1} parent=1 // pred_check_branch
      %22 = sbr.rel (0) target = $region17
    $region16: #{my_network_forward.1} parent=1 // pred_region
      _
    $region17: #{my_network_forward.1} parent=1 // pred_fallthru
      _
    // Predicated region
    $region18: #{my_network_forward.1} parent=1 // pred_check
      _
    $region19: #{my_network_forward.1} parent=1 // pred_check_branch
      %24 = sbr.rel (0) target = $region21
    $region20: #{my_network_forward.1} parent=1 // pred_region
      _
    $region21: #{my_network_forward.1} parent=1 // pred_fallthru
      _
    // Predicated region
    $region22: #{my_network_forward.1} parent=1 // pred_check
      _
    $region23: #{my_network_forward.1} parent=1 // pred_check_branch
      %26 = sbr.rel (0) target = $region25
    $region24: #{my_network_forward.1} parent=1 // pred_region
      _
    $region25: #{my_network_forward.1} parent=1 // pred_fallthru
      _
    // Predicated region
    $region26: #{my_network_forward.1} parent=1 // pred_check
      _
    $region27: #{my_network_forward.1} parent=1 // pred_check_branch
      %28 = sbr.rel (0) target = $region29
    $region28: #{my_network_forward.1} parent=1 // pred_region
      _
    $region29: #{my_network_forward.1} parent=1 // pred_fallthru
      _
    // Predicated region
    $region30: #{my_network_forward.1} parent=1 // pred_check
      _
    $region31: #{my_network_forward.1} parent=1 // pred_check_branch
      %30 = sbr.rel (0) target = $region33
    $region32: #{my_network_forward.1} parent=1 // pred_region
      _
    $region33: #{my_network_forward.1} parent=1 // pred_fallthru
      _
    // Predicated region
    $region34: #{my_network_forward.1} parent=1 // pred_check
      _
    $region35: #{my_network_forward.1} parent=1 // pred_check_branch
      %32 = sbr.rel (0) target = $region37
    $region36: #{my_network_forward.1} parent=1 // pred_region
      _
    $region37: #{my_network_forward.1} parent=1 // pred_fallthru
      _
    %v33 = vld [vmem:[%s0] sm:$0xff]
    %v34 = vld [vmem:[%s0 + $0x8] sm:$0xff]
    %v35 = vld [vmem:[%s0 + $0x10] sm:$0xff]
    %v36 = vld [vmem:[%s0 + $0x18] sm:$0xf]
    %v37 = vld [vmem:[%s0 + $0x20] sm:$0xff]
    %v38 = vld [vmem:[%s0 + $0x28] sm:$0xff]
    %v39 = vld [vmem:[%s0 + $0x30] sm:$0xff]
    %v40 = vld [vmem:[%s0 + $0x38] sm:$0xf]
    %v41 = vld [vmem:[%s1] sm:$0xff]
    %v42 = vld [vmem:[%s1 + $0x8] sm:$0xff]
    %v43 = vld [vmem:[%s1 + $0x10] sm:$0xff]
    %v44 = vld [vmem:[%s1 + $0x18] sm:$0xff]
    %v45 = vld [vmem:[%s1 + $0x20] sm:$0xff]
    %v46 = vld [vmem:[%s1 + $0x28] sm:$0xff]
    %v47 = vld [vmem:[%s1 + $0x30] sm:$0xf]
    %v48 = vld [vmem:[%s1 + $0x38] sm:$0xf]
    %vm57 = vcmask 1046528
    %v58 = vrot.slane %v33, 1
    %v59 = vrot.slane %v34, 1
    %v60 = vsel %vm57, %v58, %v59
    %v61 = vrot.slane %v35, 1
    %v62 = vsel %vm57, %v59, %v61
    %v63 = vrot.slane %v36, 1
    %v64 = vsel %vm57, %v61, %v63
    %v65 = vrot.slane %v37, 1
    %v66 = vrot.slane %v38, 1
    %v67 = vsel %vm57, %v65, %v66
    %v68 = vrot.slane %v39, 1
    %v69 = vsel %vm57, %v66, %v68
    %v70 = vrot.slane %v40, 1
    %v71 = vsel %vm57, %v68, %v70
    %s72 = scalar_lea.vmem %s1, 64
    %v73 = vld [vmem:[%s72] sm:$0xff]
    %v74 = vld [vmem:[%s72 + $0x8] sm:$0xff]
    %v75 = vld [vmem:[%s72 + $0x10] sm:$0xff]
    %v76 = vld [vmem:[%s72 + $0x18] sm:$0xff]
    %v77 = vld [vmem:[%s72 + $0x20] sm:$0xff]
    %v78 = vld [vmem:[%s72 + $0x28] sm:$0xff]
    %v79 = vld [vmem:[%s72 + $0x30] sm:$0xf]
    %v80 = vld [vmem:[%s72 + $0x38] sm:$0xf]
    %vm81 = vcmask 228352
    %v82 = vsel %vm81, %v60, 0
    %v84 = vsel %vm81, %v62, 0
    %v86 = vsel %vm81, %v64, 0
    %v88 = vsel %vm81, %v67, 0
    %v90 = vsel %vm81, %v69, 0
    %v92 = vsel %vm81, %v71, 0
    %vm94 = vcmask 1043456
    %v96 = vsel %vm94, %v79, 0
    %v99 = vsel %vm94, %v80, 0
    %101 = vmatpush.msra.mxu0 0.0
    %102 = vmatpush.msra.mxu0 0.0
    %103 = vmatpush.msra.mxu0 0.0
    %104 = vmatpush.msra.mxu0 0.0
    %105 = vmatpush.msra.mxu0 0.0
    %106 = vmatpush.msra.mxu0 0.0
    %107 = vmatpush.msra.mxu0 0.0
    %108 = vmatpush.msra.mxu0 0.0
    %109 = vmatpush.msra.mxu0 0.0
    %110 = vmatpush.msra.mxu0 0.0
    %111 = vmatpush.msra.mxu0 0.0
    %112 = vmatpush.msra.mxu0 0.0
    %113 = vmatpush.msra.mxu0 %v96
    %114 = vmatpush.msra.mxu0 %v77
    %115 = vmatpush.msra.mxu0 %v75
    %116 = vmatpush.msra.mxu0 %v73
    %117 = vmatmul.f32.gmra.mxu0 %v82
    %v118 = vpop.f32.mrf.mxu0
    %v119 = vadd.f32 0.0, %v118
    %120 = vmatmul.f32.gmra.mxu0 %v84
    %v121 = vpop.f32.mrf.mxu0
    %v122 = vadd.f32 0.0, %v121
    %123 = vmatmul.f32.gmra.mxu0 %v86
    %v124 = vpop.f32.mrf.mxu0
    %v125 = vadd.f32 0.0, %v124
    %126 = vmatmul.f32.gmra.mxu0 %v88
    %v127 = vpop.f32.mrf.mxu0
    %v128 = vadd.f32 0.0, %v127
    %129 = vmatmul.f32.gmra.mxu0 %v90
    %v130 = vpop.f32.mrf.mxu0
    %v131 = vadd.f32 0.0, %v130
    %132 = vmatmul.f32.gmra.mxu0 %v92
    %v133 = vpop.f32.mrf.mxu0
    %v134 = vadd.f32 0.0, %v133
    %135 = vdwg.mxu0
    %136 = vmatpush.msra.mxu0 0.0
    %137 = vmatpush.msra.mxu0 0.0
    %138 = vmatpush.msra.mxu0 0.0
    %139 = vmatpush.msra.mxu0 0.0
    %140 = vmatpush.msra.mxu0 0.0
    %141 = vmatpush.msra.mxu0 0.0
    %142 = vmatpush.msra.mxu0 0.0
    %143 = vmatpush.msra.mxu0 0.0
    %144 = vmatpush.msra.mxu0 0.0
    %145 = vmatpush.msra.mxu0 0.0
    %146 = vmatpush.msra.mxu0 0.0
    %147 = vmatpush.msra.mxu0 0.0
    %148 = vmatpush.msra.mxu0 %v99
    %149 = vmatpush.msra.mxu0 %v78
    %150 = vmatpush.msra.mxu0 %v76
    %151 = vmatpush.msra.mxu0 %v74
    %152 = vmatmul.f32.gmra.mxu0 %v82
    %v153 = vpop.f32.mrf.mxu0
    %v154 = vadd.f32 0.0, %v153
    %155 = vmatmul.f32.gmra.mxu0 %v84
    %v156 = vpop.f32.mrf.mxu0
    %v157 = vadd.f32 0.0, %v156
    %158 = vmatmul.f32.gmra.mxu0 %v86
    %v159 = vpop.f32.mrf.mxu0
    %v160 = vadd.f32 0.0, %v159
    %161 = vmatmul.f32.gmra.mxu0 %v88
    %v162 = vpop.f32.mrf.mxu0
    %v163 = vadd.f32 0.0, %v162
    %164 = vmatmul.f32.gmra.mxu0 %v90
    %v165 = vpop.f32.mrf.mxu0
    %v166 = vadd.f32 0.0, %v165
    %167 = vmatmul.f32.gmra.mxu0 %v92
    %v168 = vpop.f32.mrf.mxu0
    %v169 = vadd.f32 0.0, %v168
    %170 = vdwg.mxu0
    %v171 = vsel %vm81, %v33, 0
    %v173 = vsel %vm81, %v34, 0
    %v175 = vsel %vm81, %v35, 0
    %v177 = vsel %vm81, %v37, 0
    %v179 = vsel %vm81, %v38, 0
    %v181 = vsel %vm81, %v39, 0
    %v184 = vsel %vm94, %v47, 0
    %v187 = vsel %vm94, %v48, 0
    %189 = vmatpush.msra.mxu0 0.0
    %190 = vmatpush.msra.mxu0 0.0
    %191 = vmatpush.msra.mxu0 0.0
    %192 = vmatpush.msra.mxu0 0.0
    %193 = vmatpush.msra.mxu0 0.0
    %194 = vmatpush.msra.mxu0 0.0
    %195 = vmatpush.msra.mxu0 0.0
    %196 = vmatpush.msra.mxu0 0.0
    %197 = vmatpush.msra.mxu0 0.0
    %198 = vmatpush.msra.mxu0 0.0
    %199 = vmatpush.msra.mxu0 0.0
    %200 = vmatpush.msra.mxu0 0.0
    %201 = vmatpush.msra.mxu0 %v184
    %202 = vmatpush.msra.mxu0 %v45
    %203 = vmatpush.msra.mxu0 %v43
    %204 = vmatpush.msra.mxu0 %v41
    %205 = vmatmul.f32.gmra.mxu0 %v171
    %v206 = vpop.f32.mrf.mxu0
    %v207 = vadd.f32 %v119, %v206
    %208 = vmatmul.f32.gmra.mxu0 %v173
    %v209 = vpop.f32.mrf.mxu0
    %v210 = vadd.f32 %v122, %v209
    %211 = vmatmul.f32.gmra.mxu0 %v175
    %v212 = vpop.f32.mrf.mxu0
    %v213 = vadd.f32 %v125, %v212
    %214 = vmatmul.f32.gmra.mxu0 %v177
    %v215 = vpop.f32.mrf.mxu0
    %v216 = vadd.f32 %v128, %v215
    %217 = vmatmul.f32.gmra.mxu0 %v179
    %v218 = vpop.f32.mrf.mxu0
    %v219 = vadd.f32 %v131, %v218
    %220 = vmatmul.f32.gmra.mxu0 %v181
    %v221 = vpop.f32.mrf.mxu0
    %v222 = vadd.f32 %v134, %v221
    %223 = vdwg.mxu0
    %224 = vmatpush.msra.mxu0 0.0
    %225 = vmatpush.msra.mxu0 0.0
    %226 = vmatpush.msra.mxu0 0.0
    %227 = vmatpush.msra.mxu0 0.0
    %228 = vmatpush.msra.mxu0 0.0
    %229 = vmatpush.msra.mxu0 0.0
    %230 = vmatpush.msra.mxu0 0.0
    %231 = vmatpush.msra.mxu0 0.0
    %232 = vmatpush.msra.mxu0 0.0
    %233 = vmatpush.msra.mxu0 0.0
    %234 = vmatpush.msra.mxu0 0.0
    %235 = vmatpush.msra.mxu0 0.0
    %236 = vmatpush.msra.mxu0 %v187
    %237 = vmatpush.msra.mxu0 %v46
    %238 = vmatpush.msra.mxu0 %v44
    %239 = vmatpush.msra.mxu0 %v42
    %240 = vmatmul.f32.gmra.mxu0 %v171
    %v241 = vpop.f32.mrf.mxu0
    %v242 = vadd.f32 %v154, %v241
    %243 = vmatmul.f32.gmra.mxu0 %v173
    %v244 = vpop.f32.mrf.mxu0
    %v245 = vadd.f32 %v157, %v244
    %246 = vmatmul.f32.gmra.mxu0 %v175
    %v247 = vpop.f32.mrf.mxu0
    %v248 = vadd.f32 %v160, %v247
    %249 = vmatmul.f32.gmra.mxu0 %v177
    %v250 = vpop.f32.mrf.mxu0
    %v251 = vadd.f32 %v163, %v250
    %252 = vmatmul.f32.gmra.mxu0 %v179
    %v253 = vpop.f32.mrf.mxu0
    %v254 = vadd.f32 %v166, %v253
    %255 = vmatmul.f32.gmra.mxu0 %v181
    %v256 = vpop.f32.mrf.mxu0
    %v257 = vadd.f32 %v169, %v256
    %258 = vdwg.mxu0
    %vm259 = vcmask 1045504
    %v260 = vrot.slane %v33, 2
    %v261 = vrot.slane %v34, 2
    %v262 = vsel %vm259, %v260, %v261
    %v263 = vrot.slane %v35, 2
    %v264 = vsel %vm259, %v261, %v263
    %v265 = vrot.slane %v36, 2
    %v266 = vsel %vm259, %v263, %v265
    %v267 = vrot.slane %v37, 2
    %v268 = vrot.slane %v38, 2
    %v269 = vsel %vm259, %v267, %v268
    %v270 = vrot.slane %v39, 2
    %v271 = vsel %vm259, %v268, %v270
    %v272 = vrot.slane %v40, 2
    %v273 = vsel %vm259, %v270, %v272
    %s274 = scalar_lea.vmem %s1, 128
    %v275 = vld [vmem:[%s274] sm:$0xff]
    %v276 = vld [vmem:[%s274 + $0x8] sm:$0xff]
    %v277 = vld [vmem:[%s274 + $0x10] sm:$0xff]
    %v278 = vld [vmem:[%s274 + $0x18] sm:$0xff]
    %v279 = vld [vmem:[%s274 + $0x20] sm:$0xff]
    %v280 = vld [vmem:[%s274 + $0x28] sm:$0xff]
    %v281 = vld [vmem:[%s274 + $0x30] sm:$0xf]
    %v282 = vld [vmem:[%s274 + $0x38] sm:$0xf]
    %v283 = vsel %vm81, %v262, 0
    %v285 = vsel %vm81, %v264, 0
    %v287 = vsel %vm81, %v266, 0
    %v289 = vsel %vm81, %v269, 0
    %v291 = vsel %vm81, %v271, 0
    %v293 = vsel %vm81, %v273, 0
    %v296 = vsel %vm94, %v281, 0
    %v299 = vsel %vm94, %v282, 0
    %301 = vmatpush.msra.mxu0 0.0
    %302 = vmatpush.msra.mxu0 0.0
    %303 = vmatpush.msra.mxu0 0.0
    %304 = vmatpush.msra.mxu0 0.0
    %305 = vmatpush.msra.mxu0 0.0
    %306 = vmatpush.msra.mxu0 0.0
    %307 = vmatpush.msra.mxu0 0.0
    %308 = vmatpush.msra.mxu0 0.0
    %309 = vmatpush.msra.mxu0 0.0
    %310 = vmatpush.msra.mxu0 0.0
    %311 = vmatpush.msra.mxu0 0.0
    %312 = vmatpush.msra.mxu0 0.0
    %313 = vmatpush.msra.mxu0 %v296
    %314 = vmatpush.msra.mxu0 %v279
    %315 = vmatpush.msra.mxu0 %v277
    %316 = vmatpush.msra.mxu0 %v275
    %317 = vmatmul.f32.gmra.mxu0 %v283
    %v318 = vpop.f32.mrf.mxu0
    %v319 = vadd.f32 0.0, %v318
    %320 = vmatmul.f32.gmra.mxu0 %v285
    %v321 = vpop.f32.mrf.mxu0
    %v322 = vadd.f32 0.0, %v321
    %323 = vmatmul.f32.gmra.mxu0 %v287
    %v324 = vpop.f32.mrf.mxu0
    %v325 = vadd.f32 0.0, %v324
    %326 = vmatmul.f32.gmra.mxu0 %v289
    %v327 = vpop.f32.mrf.mxu0
    %v328 = vadd.f32 0.0, %v327
    %329 = vmatmul.f32.gmra.mxu0 %v291
    %v330 = vpop.f32.mrf.mxu0
    %v331 = vadd.f32 0.0, %v330
    %332 = vmatmul.f32.gmra.mxu0 %v293
    %v333 = vpop.f32.mrf.mxu0
    %v334 = vadd.f32 0.0, %v333
    %335 = vdwg.mxu0
    %336 = vmatpush.msra.mxu0 0.0
    %337 = vmatpush.msra.mxu0 0.0
    %338 = vmatpush.msra.mxu0 0.0
    %339 = vmatpush.msra.mxu0 0.0
    %340 = vmatpush.msra.mxu0 0.0
    %341 = vmatpush.msra.mxu0 0.0
    %342 = vmatpush.msra.mxu0 0.0
    %343 = vmatpush.msra.mxu0 0.0
    %344 = vmatpush.msra.mxu0 0.0
    %345 = vmatpush.msra.mxu0 0.0
    %346 = vmatpush.msra.mxu0 0.0
    %347 = vmatpush.msra.mxu0 0.0
    %348 = vmatpush.msra.mxu0 %v299
    %349 = vmatpush.msra.mxu0 %v280
    %350 = vmatpush.msra.mxu0 %v278
    %351 = vmatpush.msra.mxu0 %v276
    %352 = vmatmul.f32.gmra.mxu0 %v283
    %v353 = vpop.f32.mrf.mxu0
    %v354 = vadd.f32 0.0, %v353
    %355 = vmatmul.f32.gmra.mxu0 %v285
    %v356 = vpop.f32.mrf.mxu0
    %v357 = vadd.f32 0.0, %v356
    %358 = vmatmul.f32.gmra.mxu0 %v287
    %v359 = vpop.f32.mrf.mxu0
    %v360 = vadd.f32 0.0, %v359
    %361 = vmatmul.f32.gmra.mxu0 %v289
    %v362 = vpop.f32.mrf.mxu0
    %v363 = vadd.f32 0.0, %v362
    %364 = vmatmul.f32.gmra.mxu0 %v291
    %v365 = vpop.f32.mrf.mxu0
    %v366 = vadd.f32 0.0, %v365
    %367 = vmatmul.f32.gmra.mxu0 %v293
    %v368 = vpop.f32.mrf.mxu0
    %v369 = vadd.f32 0.0, %v368
    %370 = vdwg.mxu0
    %v371 = vadd.f32 %v207, %v319
    %v372 = vadd.f32 %v242, %v354
    %v373 = vadd.f32 %v210, %v322
    %v374 = vadd.f32 %v245, %v357
    %v375 = vadd.f32 %v213, %v325
    %v376 = vadd.f32 %v248, %v360
    %v377 = vadd.f32 %v216, %v328
    %v378 = vadd.f32 %v251, %v363
    %v379 = vadd.f32 %v219, %v331
    %v380 = vadd.f32 %v254, %v366
    %v381 = vadd.f32 %v222, %v334
    %v382 = vadd.f32 %v257, %v369
    %vm383 = vcmask 1044480
    %v384 = vrot.slane %v33, 3
    %v385 = vrot.slane %v34, 3
    %v386 = vsel %vm383, %v384, %v385
    %v387 = vrot.slane %v35, 3
    %v388 = vsel %vm383, %v385, %v387
    %v389 = vrot.slane %v36, 3
    %v390 = vsel %vm383, %v387, %v389
    %v391 = vrot.slane %v37, 3
    %v392 = vrot.slane %v38, 3
    %v393 = vsel %vm383, %v391, %v392
    %v394 = vrot.slane %v39, 3
    %v395 = vsel %vm383, %v392, %v394
    %v396 = vrot.slane %v40, 3
    %v397 = vsel %vm383, %v394, %v396
    %s398 = scalar_lea.vmem %s1, 192
    %v399 = vld [vmem:[%s398] sm:$0xff]
    %v400 = vld [vmem:[%s398 + $0x8] sm:$0xff]
    %v401 = vld [vmem:[%s398 + $0x10] sm:$0xff]
    %v402 = vld [vmem:[%s398 + $0x18] sm:$0xff]
    %v403 = vld [vmem:[%s398 + $0x20] sm:$0xff]
    %v404 = vld [vmem:[%s398 + $0x28] sm:$0xff]
    %v405 = vld [vmem:[%s398 + $0x30] sm:$0xf]
    %v406 = vld [vmem:[%s398 + $0x38] sm:$0xf]
    %v407 = vsel %vm81, %v386, 0
    %v409 = vsel %vm81, %v388, 0
    %v411 = vsel %vm81, %v390, 0
    %v413 = vsel %vm81, %v393, 0
    %v415 = vsel %vm81, %v395, 0
    %v417 = vsel %vm81, %v397, 0
    %v420 = vsel %vm94, %v405, 0
    %v423 = vsel %vm94, %v406, 0
    %425 = vmatpush.msra.mxu0 0.0
    %426 = vmatpush.msra.mxu0 0.0
    %427 = vmatpush.msra.mxu0 0.0
    %428 = vmatpush.msra.mxu0 0.0
    %429 = vmatpush.msra.mxu0 0.0
    %430 = vmatpush.msra.mxu0 0.0
    %431 = vmatpush.msra.mxu0 0.0
    %432 = vmatpush.msra.mxu0 0.0
    %433 = vmatpush.msra.mxu0 0.0
    %434 = vmatpush.msra.mxu0 0.0
    %435 = vmatpush.msra.mxu0 0.0
    %436 = vmatpush.msra.mxu0 0.0
    %437 = vmatpush.msra.mxu0 %v420
    %438 = vmatpush.msra.mxu0 %v403
    %439 = vmatpush.msra.mxu0 %v401
    %440 = vmatpush.msra.mxu0 %v399
    %441 = vmatmul.f32.gmra.mxu0 %v407
    %v442 = vpop.f32.mrf.mxu0
    %v443 = vadd.f32 0.0, %v442
    %444 = vmatmul.f32.gmra.mxu0 %v409
    %v445 = vpop.f32.mrf.mxu0
    %v446 = vadd.f32 0.0, %v445
    %447 = vmatmul.f32.gmra.mxu0 %v411
    %v448 = vpop.f32.mrf.mxu0
    %v449 = vadd.f32 0.0, %v448
    %450 = vmatmul.f32.gmra.mxu0 %v413
    %v451 = vpop.f32.mrf.mxu0
    %v452 = vadd.f32 0.0, %v451
    %453 = vmatmul.f32.gmra.mxu0 %v415
    %v454 = vpop.f32.mrf.mxu0
    %v455 = vadd.f32 0.0, %v454
    %456 = vmatmul.f32.gmra.mxu0 %v417
    %v457 = vpop.f32.mrf.mxu0
    %v458 = vadd.f32 0.0, %v457
    %459 = vdwg.mxu0
    %460 = vmatpush.msra.mxu0 0.0
    %461 = vmatpush.msra.mxu0 0.0
    %462 = vmatpush.msra.mxu0 0.0
    %463 = vmatpush.msra.mxu0 0.0
    %464 = vmatpush.msra.mxu0 0.0
    %465 = vmatpush.msra.mxu0 0.0
    %466 = vmatpush.msra.mxu0 0.0
    %467 = vmatpush.msra.mxu0 0.0
    %468 = vmatpush.msra.mxu0 0.0
    %469 = vmatpush.msra.mxu0 0.0
    %470 = vmatpush.msra.mxu0 0.0
    %471 = vmatpush.msra.mxu0 0.0
    %472 = vmatpush.msra.mxu0 %v423
    %473 = vmatpush.msra.mxu0 %v404
    %474 = vmatpush.msra.mxu0 %v402
    %475 = vmatpush.msra.mxu0 %v400
    %476 = vmatmul.f32.gmra.mxu0 %v407
    %v477 = vpop.f32.mrf.mxu0
    %v478 = vadd.f32 0.0, %v477
    %479 = vmatmul.f32.gmra.mxu0 %v409
    %v480 = vpop.f32.mrf.mxu0
    %v481 = vadd.f32 0.0, %v480
    %482 = vmatmul.f32.gmra.mxu0 %v411
    %v483 = vpop.f32.mrf.mxu0
    %v484 = vadd.f32 0.0, %v483
    %485 = vmatmul.f32.gmra.mxu0 %v413
    %v486 = vpop.f32.mrf.mxu0
    %v487 = vadd.f32 0.0, %v486
    %488 = vmatmul.f32.gmra.mxu0 %v415
    %v489 = vpop.f32.mrf.mxu0
    %v490 = vadd.f32 0.0, %v489
    %491 = vmatmul.f32.gmra.mxu0 %v417
    %v492 = vpop.f32.mrf.mxu0
    %v493 = vadd.f32 0.0, %v492
    %494 = vdwg.mxu0
    %v495 = vadd.f32 %v371, %v443
    %v496 = vadd.f32 %v372, %v478
    %v497 = vadd.f32 %v373, %v446
    %v498 = vadd.f32 %v374, %v481
    %v499 = vadd.f32 %v375, %v449
    %v500 = vadd.f32 %v376, %v484
    %v501 = vadd.f32 %v377, %v452
    %v502 = vadd.f32 %v378, %v487
    %v503 = vadd.f32 %v379, %v455
    %v504 = vadd.f32 %v380, %v490
    %v505 = vadd.f32 %v381, %v458
    %v506 = vadd.f32 %v382, %v493
    %v507 = vrot.slane %v33, 4
    %v508 = vrot.slane %v34, 4
    %v509 = vsel %vm94, %v507, %v508
    %v510 = vrot.slane %v35, 4
    %v511 = vsel %vm94, %v508, %v510
    %v512 = vrot.slane %v36, 4
    %v513 = vsel %vm94, %v510, %v512
    %v514 = vrot.slane %v37, 4
    %v515 = vrot.slane %v38, 4
    %v516 = vsel %vm94, %v514, %v515
    %v517 = vrot.slane %v39, 4
    %v518 = vsel %vm94, %v515, %v517
    %v519 = vrot.slane %v40, 4
    %v520 = vsel %vm94, %v517, %v519
    %s521 = scalar_lea.vmem %s1, 256
    %v522 = vld [vmem:[%s521] sm:$0xff]
    %v523 = vld [vmem:[%s521 + $0x8] sm:$0xff]
    %v524 = vld [vmem:[%s521 + $0x10] sm:$0xff]
    %v525 = vld [vmem:[%s521 + $0x18] sm:$0xff]
    %v526 = vld [vmem:[%s521 + $0x20] sm:$0xff]
    %v527 = vld [vmem:[%s521 + $0x28] sm:$0xff]
    %v528 = vld [vmem:[%s521 + $0x30] sm:$0xf]
    %v529 = vld [vmem:[%s521 + $0x38] sm:$0xf]
    %v530 = vsel %vm81, %v509, 0
    %v532 = vsel %vm81, %v511, 0
    %v534 = vsel %vm81, %v513, 0
    %v536 = vsel %vm81, %v516, 0
    %v538 = vsel %vm81, %v518, 0
    %v540 = vsel %vm81, %v520, 0
    %v543 = vsel %vm94, %v528, 0
    %v546 = vsel %vm94, %v529, 0
    %548 = vmatpush.msra.mxu0 0.0
    %549 = vmatpush.msra.mxu0 0.0
    %550 = vmatpush.msra.mxu0 0.0
    %551 = vmatpush.msra.mxu0 0.0
    %552 = vmatpush.msra.mxu0 0.0
    %553 = vmatpush.msra.mxu0 0.0
    %554 = vmatpush.msra.mxu0 0.0
    %555 = vmatpush.msra.mxu0 0.0
    %556 = vmatpush.msra.mxu0 0.0
    %557 = vmatpush.msra.mxu0 0.0
    %558 = vmatpush.msra.mxu0 0.0
    %559 = vmatpush.msra.mxu0 0.0
    %560 = vmatpush.msra.mxu0 %v543
    %561 = vmatpush.msra.mxu0 %v526
    %562 = vmatpush.msra.mxu0 %v524
    %563 = vmatpush.msra.mxu0 %v522
    %564 = vmatmul.f32.gmra.mxu0 %v530
    %v565 = vpop.f32.mrf.mxu0
    %v566 = vadd.f32 0.0, %v565
    %567 = vmatmul.f32.gmra.mxu0 %v532
    %v568 = vpop.f32.mrf.mxu0
    %v569 = vadd.f32 0.0, %v568
    %570 = vmatmul.f32.gmra.mxu0 %v534
    %v571 = vpop.f32.mrf.mxu0
    %v572 = vadd.f32 0.0, %v571
    %573 = vmatmul.f32.gmra.mxu0 %v536
    %v574 = vpop.f32.mrf.mxu0
    %v575 = vadd.f32 0.0, %v574
    %576 = vmatmul.f32.gmra.mxu0 %v538
    %v577 = vpop.f32.mrf.mxu0
    %v578 = vadd.f32 0.0, %v577
    %579 = vmatmul.f32.gmra.mxu0 %v540
    %v580 = vpop.f32.mrf.mxu0
    %v581 = vadd.f32 0.0, %v580
    %582 = vdwg.mxu0
    %583 = vmatpush.msra.mxu0 0.0
    %584 = vmatpush.msra.mxu0 0.0
    %585 = vmatpush.msra.mxu0 0.0
    %586 = vmatpush.msra.mxu0 0.0
    %587 = vmatpush.msra.mxu0 0.0
    %588 = vmatpush.msra.mxu0 0.0
    %589 = vmatpush.msra.mxu0 0.0
    %590 = vmatpush.msra.mxu0 0.0
    %591 = vmatpush.msra.mxu0 0.0
    %592 = vmatpush.msra.mxu0 0.0
    %593 = vmatpush.msra.mxu0 0.0
    %594 = vmatpush.msra.mxu0 0.0
    %595 = vmatpush.msra.mxu0 %v546
    %596 = vmatpush.msra.mxu0 %v527
    %597 = vmatpush.msra.mxu0 %v525
    %598 = vmatpush.msra.mxu0 %v523
    %599 = vmatmul.f32.gmra.mxu0 %v530
    %v600 = vpop.f32.mrf.mxu0
    %v601 = vadd.f32 0.0, %v600
    %602 = vmatmul.f32.gmra.mxu0 %v532
    %v603 = vpop.f32.mrf.mxu0
    %v604 = vadd.f32 0.0, %v603
    %605 = vmatmul.f32.gmra.mxu0 %v534
    %v606 = vpop.f32.mrf.mxu0
    %v607 = vadd.f32 0.0, %v606
    %608 = vmatmul.f32.gmra.mxu0 %v536
    %v609 = vpop.f32.mrf.mxu0
    %v610 = vadd.f32 0.0, %v609
    %611 = vmatmul.f32.gmra.mxu0 %v538
    %v612 = vpop.f32.mrf.mxu0
    %v613 = vadd.f32 0.0, %v612
    %614 = vmatmul.f32.gmra.mxu0 %v540
    %v615 = vpop.f32.mrf.mxu0
    %v616 = vadd.f32 0.0, %v615
    %617 = vdwg.mxu0
    %v618 = vadd.f32 %v495, %v566
    %v619 = vadd.f32 %v496, %v601
    %v620 = vadd.f32 %v497, %v569
    %v621 = vadd.f32 %v498, %v604
    %v622 = vadd.f32 %v499, %v572
    %v623 = vadd.f32 %v500, %v607
    %v624 = vadd.f32 %v501, %v575
    %v625 = vadd.f32 %v502, %v610
    %v626 = vadd.f32 %v503, %v578
    %v627 = vadd.f32 %v504, %v613
    %v628 = vadd.f32 %v505, %v581
    %v629 = vadd.f32 %v506, %v616
    %v630 = vld [vmem:[%s2] sm:$0x3]
    %v632 = vperm.slane %v630, 0
    %v633 = vperm.slane %v630, 1
    %v636 = vadd.f32 %v618, %v632
    %v637 = vadd.f32 %v619, %v633
    %v638 = vadd.f32 %v620, %v632
    %v639 = vadd.f32 %v621, %v633
    %v640 = vadd.f32 %v622, %v632
    %v641 = vadd.f32 %v623, %v633
    %v642 = vadd.f32 %v624, %v632
    %v643 = vadd.f32 %v625, %v633
    %v644 = vadd.f32 %v626, %v632
    %v645 = vadd.f32 %v627, %v633
    %v646 = vadd.f32 %v628, %v632
    %v647 = vadd.f32 %v629, %v633
    %660 = vrot.lane.b32.xlu0 %v636, 8
    %v661 = vpop.permute.xlu0 %660
    %662 = vrot.lane.b32.xlu0 %v637, 8
    %v663 = vpop.permute.xlu0 %662
    %664 = vrot.lane.b32.xlu0 %v638, 8
    %v665 = vpop.permute.xlu0 %664
    %666 = vrot.lane.b32.xlu0 %v639, 8
    %v667 = vpop.permute.xlu0 %666
    %668 = vrot.lane.b32.xlu0 %v640, 8
    %v669 = vpop.permute.xlu0 %668
    %670 = vrot.lane.b32.xlu0 %v641, 8
    %v671 = vpop.permute.xlu0 %670
    %672 = vrot.lane.b32.xlu0 %v642, 8
    %v673 = vpop.permute.xlu0 %672
    %674 = vrot.lane.b32.xlu0 %v643, 8
    %v675 = vpop.permute.xlu0 %674
    %676 = vrot.lane.b32.xlu0 %v644, 8
    %v677 = vpop.permute.xlu0 %676
    %678 = vrot.lane.b32.xlu0 %v645, 8
    %v679 = vpop.permute.xlu0 %678
    %680 = vrot.lane.b32.xlu0 %v646, 8
    %v681 = vpop.permute.xlu0 %680
    %682 = vrot.lane.b32.xlu0 %v647, 8
    %v683 = vpop.permute.xlu0 %682
    %vm684 = vcmask 64512
    %v685 = vsel %vm684, %v661, %v663
    %v686 = vsel %vm684, %v665, %v667
    %v687 = vsel %vm684, %v669, %v671
    %v688 = vsel %vm684, %v673, %v675
    %v689 = vsel %vm684, %v677, %v679
    %v690 = vsel %vm684, %v681, %v683
    %v697 = vmax.f32 %v636, %v685
    %v698 = vmax.f32 %v638, %v686
    %v699 = vmax.f32 %v640, %v687
    %v700 = vmax.f32 %v642, %v688
    %v701 = vmax.f32 %v644, %v689
    %v702 = vmax.f32 %v646, %v690
    %v709 = vrot.slane %v697, 2
    %v710 = vrot.slane %v697, 4
    %v711 = vrot.slane %v697, 6
    %v712 = vrot.slane %v698, 2
    %v713 = vrot.slane %v698, 4
    %v714 = vrot.slane %v698, 6
    %v715 = vrot.slane %v699, 2
    %v716 = vrot.slane %v699, 4
    %v717 = vrot.slane %v699, 6
    %v718 = vrot.slane %v700, 2
    %v719 = vrot.slane %v700, 4
    %v720 = vrot.slane %v700, 6
    %v721 = vrot.slane %v701, 2
    %v722 = vrot.slane %v701, 4
    %v723 = vrot.slane %v701, 6
    %v724 = vrot.slane %v702, 2
    %v725 = vrot.slane %v702, 4
    %v726 = vrot.slane %v702, 6
    %v745 = vrot.slane %v697, 7
    %v746 = vrot.slane %v745, 2
    %v747 = vrot.slane %v709, 7
    %v748 = vrot.slane %v747, 2
    %v749 = vrot.slane %v710, 7
    %v750 = vrot.slane %v749, 2
    %v751 = vrot.slane %v711, 7
    %v752 = vrot.slane %v751, 2
    %v753 = vrot.slane %v698, 7
    %v754 = vrot.slane %v753, 2
    %v755 = vrot.slane %v712, 7
    %v756 = vrot.slane %v755, 2
    %v757 = vrot.slane %v713, 7
    %v758 = vrot.slane %v757, 2
    %v759 = vrot.slane %v714, 7
    %v760 = vrot.slane %v759, 2
    %v761 = vrot.slane %v699, 7
    %v762 = vrot.slane %v761, 2
    %v763 = vrot.slane %v715, 7
    %v764 = vrot.slane %v763, 2
    %v765 = vrot.slane %v716, 7
    %v766 = vrot.slane %v765, 2
    %v767 = vrot.slane %v717, 7
    %v768 = vrot.slane %v767, 2
    %v769 = vrot.slane %v700, 7
    %v770 = vrot.slane %v769, 2
    %v771 = vrot.slane %v718, 7
    %v772 = vrot.slane %v771, 2
    %v773 = vrot.slane %v719, 7
    %v774 = vrot.slane %v773, 2
    %v775 = vrot.slane %v720, 7
    %v776 = vrot.slane %v775, 2
    %v777 = vrot.slane %v701, 7
    %v778 = vrot.slane %v777, 2
    %v779 = vrot.slane %v721, 7
    %v780 = vrot.slane %v779, 2
    %v781 = vrot.slane %v722, 7
    %v782 = vrot.slane %v781, 2
    %v783 = vrot.slane %v723, 7
    %v784 = vrot.slane %v783, 2
    %v785 = vrot.slane %v702, 7
    %v786 = vrot.slane %v785, 2
    %v787 = vrot.slane %v724, 7
    %v788 = vrot.slane %v787, 2
    %v789 = vrot.slane %v725, 7
    %v790 = vrot.slane %v789, 2
    %v791 = vrot.slane %v726, 7
    %v792 = vrot.slane %v791, 2
    %v817 = vmax.f32 %v697, %v746
    %v818 = vmax.f32 %v709, %v748
    %v819 = vmax.f32 %v710, %v750
    %v820 = vmax.f32 %v711, %v752
    %v821 = vmax.f32 %v698, %v754
    %v822 = vmax.f32 %v712, %v756
    %v823 = vmax.f32 %v713, %v758
    %v824 = vmax.f32 %v714, %v760
    %v825 = vmax.f32 %v699, %v762
    %v826 = vmax.f32 %v715, %v764
    %v827 = vmax.f32 %v716, %v766
    %v828 = vmax.f32 %v717, %v768
    %v829 = vmax.f32 %v700, %v770
    %v830 = vmax.f32 %v718, %v772
    %v831 = vmax.f32 %v719, %v774
    %v832 = vmax.f32 %v720, %v776
    %v833 = vmax.f32 %v701, %v778
    %v834 = vmax.f32 %v721, %v780
    %v835 = vmax.f32 %v722, %v782
    %v836 = vmax.f32 %v723, %v784
    %v837 = vmax.f32 %v702, %v786
    %v838 = vmax.f32 %v724, %v788
    %v839 = vmax.f32 %v725, %v790
    %v840 = vmax.f32 %v726, %v792
    %v841 = vmax.f32 %v817, 0.0
    %v842 = vmax.f32 %v818, 0.0
    %v843 = vmax.f32 %v819, 0.0
    %v844 = vmax.f32 %v820, 0.0
    %v845 = vmax.f32 %v821, 0.0
    %v846 = vmax.f32 %v822, 0.0
    %v847 = vmax.f32 %v823, 0.0
    %v848 = vmax.f32 %v824, 0.0
    %v849 = vmax.f32 %v825, 0.0
    %v850 = vmax.f32 %v826, 0.0
    %v851 = vmax.f32 %v827, 0.0
    %v852 = vmax.f32 %v828, 0.0
    %v853 = vmax.f32 %v829, 0.0
    %v854 = vmax.f32 %v830, 0.0
    %v855 = vmax.f32 %v831, 0.0
    %v856 = vmax.f32 %v832, 0.0
    %v857 = vmax.f32 %v833, 0.0
    %v858 = vmax.f32 %v834, 0.0
    %v859 = vmax.f32 %v835, 0.0
    %v860 = vmax.f32 %v836, 0.0
    %v861 = vmax.f32 %v837, 0.0
    %v862 = vmax.f32 %v838, 0.0
    %v863 = vmax.f32 %v839, 0.0
    %v864 = vmax.f32 %v840, 0.0
    %v865 = vld [vmem:[%s3] sm:$0xff]
    %v866 = vld [vmem:[%s3 + $0x8] sm:$0xff]
    %v867 = vld [vmem:[%s3 + $0x10] sm:$0xff]
    %v868 = vld [vmem:[%s3 + $0x18] sm:$0xff]
    %v869 = vld [vmem:[%s3 + $0x20] sm:$0xff]
    %v870 = vld [vmem:[%s3 + $0x28] sm:$0xff]
    %v871 = vld [vmem:[%s3 + $0x30] sm:$0xff]
    %v872 = vld [vmem:[%s3 + $0x38] sm:$0xff]
    %v873 = vld [vmem:[%s3 + $0x40] sm:$0xff]
    %v874 = vld [vmem:[%s3 + $0x48] sm:$0xff]
    %v875 = vld [vmem:[%s3 + $0x50] sm:$0xff]
    %v876 = vld [vmem:[%s3 + $0x58] sm:$0xff]
    %v877 = vld [vmem:[%s3 + $0x60] sm:$0xff]
    %v878 = vld [vmem:[%s3 + $0x68] sm:$0xff]
    %v879 = vld [vmem:[%s3 + $0x70] sm:$0xff]
    %v880 = vld [vmem:[%s3 + $0x78] sm:$0xff]
    %v881 = vld [vmem:[%s3 + $0x80] sm:$0xff]
    %v882 = vld [vmem:[%s3 + $0x88] sm:$0xff]
    %v883 = vld [vmem:[%s3 + $0x90] sm:$0xff]
    %v884 = vld [vmem:[%s3 + $0x98] sm:$0xff]
    %v885 = vld [vmem:[%s3 + $0xa0] sm:$0xff]
    %v886 = vld [vmem:[%s3 + $0xa8] sm:$0xff]
    %v887 = vld [vmem:[%s3 + $0xb0] sm:$0xff]
    %v888 = vld [vmem:[%s3 + $0xb8] sm:$0xff]
    %v889 = vld [vmem:[%s3 + $0xc0] sm:$0xff]
    %v890 = vld [vmem:[%s3 + $0xc8] sm:$0xff]
    %v891 = vld [vmem:[%s3 + $0xd0] sm:$0xff]
    %v892 = vld [vmem:[%s3 + $0xd8] sm:$0xff]
    %v893 = vld [vmem:[%s3 + $0xe0] sm:$0xff]
    %v894 = vld [vmem:[%s3 + $0xe8] sm:$0xff]
    %s895 = scalar_lea.vmem %s3, 240
    %v896 = vld [vmem:[%s895] sm:$0xff]
    %v897 = vld [vmem:[%s895 + $0x8] sm:$0xff]
    %v898 = vld [vmem:[%s895 + $0x10] sm:$0xff]
    %v899 = vld [vmem:[%s895 + $0x18] sm:$0xff]
    %v900 = vld [vmem:[%s895 + $0x20] sm:$0xff]
    %v901 = vld [vmem:[%s895 + $0x28] sm:$0xff]
    %v902 = vld [vmem:[%s895 + $0x30] sm:$0xff]
    %v903 = vld [vmem:[%s895 + $0x38] sm:$0xff]
    %v904 = vld [vmem:[%s895 + $0x40] sm:$0xff]
    %v905 = vld [vmem:[%s895 + $0x48] sm:$0xff]
    %v906 = vld [vmem:[%s895 + $0x50] sm:$0xff]
    %v907 = vld [vmem:[%s895 + $0x58] sm:$0xff]
    %v908 = vld [vmem:[%s895 + $0x60] sm:$0xff]
    %v909 = vld [vmem:[%s895 + $0x68] sm:$0xff]
    %v910 = vld [vmem:[%s895 + $0x70] sm:$0xff]
    %v911 = vld [vmem:[%s895 + $0x78] sm:$0xff]
    %v912 = vld [vmem:[%s895 + $0x80] sm:$0xff]
    %v913 = vld [vmem:[%s895 + $0x88] sm:$0xff]
    %v914 = vld [vmem:[%s895 + $0x90] sm:$0xff]
    %v915 = vld [vmem:[%s895 + $0x98] sm:$0xff]
    %v916 = vld [vmem:[%s895 + $0xa0] sm:$0xff]
    %v917 = vld [vmem:[%s895 + $0xa8] sm:$0xff]
    %v918 = vld [vmem:[%s895 + $0xb0] sm:$0xff]
    %v919 = vld [vmem:[%s895 + $0xb8] sm:$0xff]
    %v920 = vld [vmem:[%s895 + $0xc0] sm:$0xff]
    %v921 = vld [vmem:[%s895 + $0xc8] sm:$0xff]
    %v922 = vld [vmem:[%s895 + $0xd0] sm:$0xff]
    %v923 = vld [vmem:[%s895 + $0xd8] sm:$0xff]
    %v924 = vld [vmem:[%s895 + $0xe0] sm:$0xff]
    %v925 = vld [vmem:[%s895 + $0xe8] sm:$0xff]
    %v942 = vperm.slane %v842, 0
    %v943 = vperm.slane %v843, 0
    %v944 = vperm.slane %v844, 0
    %v945 = vperm.slane %v845, 0
    %v946 = vperm.slane %v846, 0
    %v947 = vperm.slane %v847, 0
    %v948 = vperm.slane %v848, 0
    %v949 = vperm.slane %v849, 0
    %v950 = vperm.slane %v854, 0
    %v951 = vperm.slane %v855, 0
    %v952 = vperm.slane %v856, 0
    %v953 = vperm.slane %v857, 0
    %v954 = vperm.slane %v858, 0
    %v955 = vperm.slane %v859, 0
    %v956 = vperm.slane %v860, 0
    %v957 = vperm.slane %v861, 0
    %vm958 = vcmask 1041409
    %v959 = vsel %vm958, %v943, %v942
    %vm960 = vcmask 1042434
    %v961 = vsel %vm960, %v944, %v959
    %vm962 = vcmask 1043459
    %v963 = vsel %vm962, %v945, %v961
    %vm964 = vcmask 1044484
    %v965 = vsel %vm964, %v946, %v963
    %vm966 = vcmask 1045509
    %v967 = vsel %vm966, %v947, %v965
    %vm968 = vcmask 1046534
    %v969 = vsel %vm968, %v948, %v967
    %vm970 = vcmask 1047559
    %v971 = vsel %vm970, %v949, %v969
    %v972 = vsel %vm958, %v951, %v950
    %v973 = vsel %vm960, %v952, %v972
    %v974 = vsel %vm962, %v953, %v973
    %v975 = vsel %vm964, %v954, %v974
    %v976 = vsel %vm966, %v955, %v975
    %v977 = vsel %vm968, %v956, %v976
    %v978 = vsel %vm970, %v957, %v977
    %vm979 = vcmask 982016
    %v980 = vsel %vm979, %v971, 0
    %v982 = vsel %vm979, %v978, 0
    %984 = vmatpush.msra.mxu0 0.0
    %985 = vmatpush.msra.mxu0 %v924
    %986 = vmatpush.msra.mxu0 %v922
    %987 = vmatpush.msra.mxu0 %v920
    %988 = vmatpush.msra.mxu0 %v918
    %989 = vmatpush.msra.mxu0 %v916
    %990 = vmatpush.msra.mxu0 %v914
    %991 = vmatpush.msra.mxu0 %v912
    %992 = vmatpush.msra.mxu0 %v910
    %993 = vmatpush.msra.mxu0 %v908
    %994 = vmatpush.msra.mxu0 %v906
    %995 = vmatpush.msra.mxu0 %v904
    %996 = vmatpush.msra.mxu0 %v902
    %997 = vmatpush.msra.mxu0 %v900
    %998 = vmatpush.msra.mxu0 %v898
    %999 = vmatpush.msra.mxu0 %v896
    %1000 = vmatmul.f32.gmra.mxu0 %v980
    %v1001 = vpop.f32.mrf.mxu0
    %v1002 = vadd.f32 0.0, %v1001
    %1003 = vmatmul.f32.gmra.mxu0 %v982
    %v1004 = vpop.f32.mrf.mxu0
    %v1005 = vadd.f32 0.0, %v1004
    %1006 = vdwg.mxu0
    %1007 = vmatpush.msra.mxu0 0.0
    %1008 = vmatpush.msra.mxu0 %v925
    %1009 = vmatpush.msra.mxu0 %v923
    %1010 = vmatpush.msra.mxu0 %v921
    %1011 = vmatpush.msra.mxu0 %v919
    %1012 = vmatpush.msra.mxu0 %v917
    %1013 = vmatpush.msra.mxu0 %v915
    %1014 = vmatpush.msra.mxu0 %v913
    %1015 = vmatpush.msra.mxu0 %v911
    %1016 = vmatpush.msra.mxu0 %v909
    %1017 = vmatpush.msra.mxu0 %v907
    %1018 = vmatpush.msra.mxu0 %v905
    %1019 = vmatpush.msra.mxu0 %v903
    %1020 = vmatpush.msra.mxu0 %v901
    %1021 = vmatpush.msra.mxu0 %v899
    %1022 = vmatpush.msra.mxu0 %v897
    %1023 = vmatmul.f32.gmra.mxu0 %v980
    %v1024 = vpop.f32.mrf.mxu0
    %v1025 = vadd.f32 0.0, %v1024
    %1026 = vmatmul.f32.gmra.mxu0 %v982
    %v1027 = vpop.f32.mrf.mxu0
    %v1028 = vadd.f32 0.0, %v1027
    %1029 = vdwg.mxu0
    %v1032 = vperm.slane %v841, 0
    %v1033 = vperm.slane %v853, 0
    %v1034 = vsel %vm958, %v942, %v1032
    %v1035 = vsel %vm960, %v943, %v1034
    %v1036 = vsel %vm962, %v944, %v1035
    %v1037 = vsel %vm964, %v945, %v1036
    %v1038 = vsel %vm966, %v946, %v1037
    %v1039 = vsel %vm968, %v947, %v1038
    %v1040 = vsel %vm970, %v948, %v1039
    %v1041 = vsel %vm958, %v950, %v1033
    %v1042 = vsel %vm960, %v951, %v1041
    %v1043 = vsel %vm962, %v952, %v1042
    %v1044 = vsel %vm964, %v953, %v1043
    %v1045 = vsel %vm966, %v954, %v1044
    %v1046 = vsel %vm968, %v955, %v1045
    %v1047 = vsel %vm970, %v956, %v1046
    %v1048 = vsel %vm979, %v1040, 0
    %v1050 = vsel %vm979, %v1047, 0
    %1052 = vmatpush.msra.mxu0 0.0
    %1053 = vmatpush.msra.mxu0 %v893
    %1054 = vmatpush.msra.mxu0 %v891
    %1055 = vmatpush.msra.mxu0 %v889
    %1056 = vmatpush.msra.mxu0 %v887
    %1057 = vmatpush.msra.mxu0 %v885
    %1058 = vmatpush.msra.mxu0 %v883
    %1059 = vmatpush.msra.mxu0 %v881
    %1060 = vmatpush.msra.mxu0 %v879
    %1061 = vmatpush.msra.mxu0 %v877
    %1062 = vmatpush.msra.mxu0 %v875
    %1063 = vmatpush.msra.mxu0 %v873
    %1064 = vmatpush.msra.mxu0 %v871
    %1065 = vmatpush.msra.mxu0 %v869
    %1066 = vmatpush.msra.mxu0 %v867
    %1067 = vmatpush.msra.mxu0 %v865
    %1068 = vmatmul.f32.gmra.mxu0 %v1048
    %v1069 = vpop.f32.mrf.mxu0
    %v1070 = vadd.f32 %v1002, %v1069
    %1071 = vmatmul.f32.gmra.mxu0 %v1050
    %v1072 = vpop.f32.mrf.mxu0
    %v1073 = vadd.f32 %v1005, %v1072
    %1074 = vdwg.mxu0
    %1075 = vmatpush.msra.mxu0 0.0
    %1076 = vmatpush.msra.mxu0 %v894
    %1077 = vmatpush.msra.mxu0 %v892
    %1078 = vmatpush.msra.mxu0 %v890
    %1079 = vmatpush.msra.mxu0 %v888
    %1080 = vmatpush.msra.mxu0 %v886
    %1081 = vmatpush.msra.mxu0 %v884
    %1082 = vmatpush.msra.mxu0 %v882
    %1083 = vmatpush.msra.mxu0 %v880
    %1084 = vmatpush.msra.mxu0 %v878
    %1085 = vmatpush.msra.mxu0 %v876
    %1086 = vmatpush.msra.mxu0 %v874
    %1087 = vmatpush.msra.mxu0 %v872
    %1088 = vmatpush.msra.mxu0 %v870
    %1089 = vmatpush.msra.mxu0 %v868
    %1090 = vmatpush.msra.mxu0 %v866
    %1091 = vmatmul.f32.gmra.mxu0 %v1048
    %v1092 = vpop.f32.mrf.mxu0
    %v1093 = vadd.f32 %v1025, %v1092
    %1094 = vmatmul.f32.gmra.mxu0 %v1050
    %v1095 = vpop.f32.mrf.mxu0
    %v1096 = vadd.f32 %v1028, %v1095
    %1097 = vdwg.mxu0
    %s1098 = scalar_lea.vmem %s3, 480
    %v1099 = vld [vmem:[%s1098] sm:$0xff]
    %v1100 = vld [vmem:[%s1098 + $0x8] sm:$0xff]
    %v1101 = vld [vmem:[%s1098 + $0x10] sm:$0xff]
    %v1102 = vld [vmem:[%s1098 + $0x18] sm:$0xff]
    %v1103 = vld [vmem:[%s1098 + $0x20] sm:$0xff]
    %v1104 = vld [vmem:[%s1098 + $0x28] sm:$0xff]
    %v1105 = vld [vmem:[%s1098 + $0x30] sm:$0xff]
    %v1106 = vld [vmem:[%s1098 + $0x38] sm:$0xff]
    %v1107 = vld [vmem:[%s1098 + $0x40] sm:$0xff]
    %v1108 = vld [vmem:[%s1098 + $0x48] sm:$0xff]
    %v1109 = vld [vmem:[%s1098 + $0x50] sm:$0xff]
    %v1110 = vld [vmem:[%s1098 + $0x58] sm:$0xff]
    %v1111 = vld [vmem:[%s1098 + $0x60] sm:$0xff]
    %v1112 = vld [vmem:[%s1098 + $0x68] sm:$0xff]
    %v1113 = vld [vmem:[%s1098 + $0x70] sm:$0xff]
    %v1114 = vld [vmem:[%s1098 + $0x78] sm:$0xff]
    %v1115 = vld [vmem:[%s1098 + $0x80] sm:$0xff]
    %v1116 = vld [vmem:[%s1098 + $0x88] sm:$0xff]
    %v1117 = vld [vmem:[%s1098 + $0x90] sm:$0xff]
    %v1118 = vld [vmem:[%s1098 + $0x98] sm:$0xff]
    %v1119 = vld [vmem:[%s1098 + $0xa0] sm:$0xff]
    %v1120 = vld [vmem:[%s1098 + $0xa8] sm:$0xff]
    %v1121 = vld [vmem:[%s1098 + $0xb0] sm:$0xff]
    %v1122 = vld [vmem:[%s1098 + $0xb8] sm:$0xff]
    %v1123 = vld [vmem:[%s1098 + $0xc0] sm:$0xff]
    %v1124 = vld [vmem:[%s1098 + $0xc8] sm:$0xff]
    %v1125 = vld [vmem:[%s1098 + $0xd0] sm:$0xff]
    %v1126 = vld [vmem:[%s1098 + $0xd8] sm:$0xff]
    %v1127 = vld [vmem:[%s1098 + $0xe0] sm:$0xff]
    %v1128 = vld [vmem:[%s1098 + $0xe8] sm:$0xff]
    %v1131 = vperm.slane %v850, 0
    %v1132 = vperm.slane %v862, 0
    %v1133 = vsel %vm958, %v944, %v943
    %v1134 = vsel %vm960, %v945, %v1133
    %v1135 = vsel %vm962, %v946, %v1134
    %v1136 = vsel %vm964, %v947, %v1135
    %v1137 = vsel %vm966, %v948, %v1136
    %v1138 = vsel %vm968, %v949, %v1137
    %v1139 = vsel %vm970, %v1131, %v1138
    %v1140 = vsel %vm958, %v952, %v951
    %v1141 = vsel %vm960, %v953, %v1140
    %v1142 = vsel %vm962, %v954, %v1141
    %v1143 = vsel %vm964, %v955, %v1142
    %v1144 = vsel %vm966, %v956, %v1143
    %v1145 = vsel %vm968, %v957, %v1144
    %v1146 = vsel %vm970, %v1132, %v1145
    %v1147 = vsel %vm979, %v1139, 0
    %v1149 = vsel %vm979, %v1146, 0
    %1151 = vmatpush.msra.mxu0 0.0
    %1152 = vmatpush.msra.mxu0 %v1127
    %1153 = vmatpush.msra.mxu0 %v1125
    %1154 = vmatpush.msra.mxu0 %v1123
    %1155 = vmatpush.msra.mxu0 %v1121
    %1156 = vmatpush.msra.mxu0 %v1119
    %1157 = vmatpush.msra.mxu0 %v1117
    %1158 = vmatpush.msra.mxu0 %v1115
    %1159 = vmatpush.msra.mxu0 %v1113
    %1160 = vmatpush.msra.mxu0 %v1111
    %1161 = vmatpush.msra.mxu0 %v1109
    %1162 = vmatpush.msra.mxu0 %v1107
    %1163 = vmatpush.msra.mxu0 %v1105
    %1164 = vmatpush.msra.mxu0 %v1103
    %1165 = vmatpush.msra.mxu0 %v1101
    %1166 = vmatpush.msra.mxu0 %v1099
    %1167 = vmatmul.f32.gmra.mxu0 %v1147
    %v1168 = vpop.f32.mrf.mxu0
    %v1169 = vadd.f32 0.0, %v1168
    %1170 = vmatmul.f32.gmra.mxu0 %v1149
    %v1171 = vpop.f32.mrf.mxu0
    %v1172 = vadd.f32 0.0, %v1171
    %1173 = vdwg.mxu0
    %1174 = vmatpush.msra.mxu0 0.0
    %1175 = vmatpush.msra.mxu0 %v1128
    %1176 = vmatpush.msra.mxu0 %v1126
    %1177 = vmatpush.msra.mxu0 %v1124
    %1178 = vmatpush.msra.mxu0 %v1122
    %1179 = vmatpush.msra.mxu0 %v1120
    %1180 = vmatpush.msra.mxu0 %v1118
    %1181 = vmatpush.msra.mxu0 %v1116
    %1182 = vmatpush.msra.mxu0 %v1114
    %1183 = vmatpush.msra.mxu0 %v1112
    %1184 = vmatpush.msra.mxu0 %v1110
    %1185 = vmatpush.msra.mxu0 %v1108
    %1186 = vmatpush.msra.mxu0 %v1106
    %1187 = vmatpush.msra.mxu0 %v1104
    %1188 = vmatpush.msra.mxu0 %v1102
    %1189 = vmatpush.msra.mxu0 %v1100
    %1190 = vmatmul.f32.gmra.mxu0 %v1147
    %v1191 = vpop.f32.mrf.mxu0
    %v1192 = vadd.f32 0.0, %v1191
    %1193 = vmatmul.f32.gmra.mxu0 %v1149
    %v1194 = vpop.f32.mrf.mxu0
    %v1195 = vadd.f32 0.0, %v1194
    %1196 = vdwg.mxu0
    %v1197 = vadd.f32 %v1070, %v1169
    %v1198 = vadd.f32 %v1093, %v1192
    %v1199 = vadd.f32 %v1073, %v1172
    %v1200 = vadd.f32 %v1096, %v1195
    %s1201 = scalar_lea.vmem %s3, 720
    %v1202 = vld [vmem:[%s1201] sm:$0xff]
    %v1203 = vld [vmem:[%s1201 + $0x8] sm:$0xff]
    %v1204 = vld [vmem:[%s1201 + $0x10] sm:$0xff]
    %v1205 = vld [vmem:[%s1201 + $0x18] sm:$0xff]
    %v1206 = vld [vmem:[%s1201 + $0x20] sm:$0xff]
    %v1207 = vld [vmem:[%s1201 + $0x28] sm:$0xff]
    %v1208 = vld [vmem:[%s1201 + $0x30] sm:$0xff]
    %v1209 = vld [vmem:[%s1201 + $0x38] sm:$0xff]
    %v1210 = vld [vmem:[%s1201 + $0x40] sm:$0xff]
    %v1211 = vld [vmem:[%s1201 + $0x48] sm:$0xff]
    %v1212 = vld [vmem:[%s1201 + $0x50] sm:$0xff]
    %v1213 = vld [vmem:[%s1201 + $0x58] sm:$0xff]
    %v1214 = vld [vmem:[%s1201 + $0x60] sm:$0xff]
    %v1215 = vld [vmem:[%s1201 + $0x68] sm:$0xff]
    %v1216 = vld [vmem:[%s1201 + $0x70] sm:$0xff]
    %v1217 = vld [vmem:[%s1201 + $0x78] sm:$0xff]
    %v1218 = vld [vmem:[%s1201 + $0x80] sm:$0xff]
    %v1219 = vld [vmem:[%s1201 + $0x88] sm:$0xff]
    %v1220 = vld [vmem:[%s1201 + $0x90] sm:$0xff]
    %v1221 = vld [vmem:[%s1201 + $0x98] sm:$0xff]
    %v1222 = vld [vmem:[%s1201 + $0xa0] sm:$0xff]
    %v1223 = vld [vmem:[%s1201 + $0xa8] sm:$0xff]
    %v1224 = vld [vmem:[%s1201 + $0xb0] sm:$0xff]
    %v1225 = vld [vmem:[%s1201 + $0xb8] sm:$0xff]
    %v1226 = vld [vmem:[%s1201 + $0xc0] sm:$0xff]
    %v1227 = vld [vmem:[%s1201 + $0xc8] sm:$0xff]
    %v1228 = vld [vmem:[%s1201 + $0xd0] sm:$0xff]
    %v1229 = vld [vmem:[%s1201 + $0xd8] sm:$0xff]
    %v1230 = vld [vmem:[%s1201 + $0xe0] sm:$0xff]
    %v1231 = vld [vmem:[%s1201 + $0xe8] sm:$0xff]
    %v1234 = vperm.slane %v851, 0
    %v1235 = vperm.slane %v863, 0
    %v1236 = vsel %vm958, %v945, %v944
    %v1237 = vsel %vm960, %v946, %v1236
    %v1238 = vsel %vm962, %v947, %v1237
    %v1239 = vsel %vm964, %v948, %v1238
    %v1240 = vsel %vm966, %v949, %v1239
    %v1241 = vsel %vm968, %v1131, %v1240
    %v1242 = vsel %vm970, %v1234, %v1241
    %v1243 = vsel %vm958, %v953, %v952
    %v1244 = vsel %vm960, %v954, %v1243
    %v1245 = vsel %vm962, %v955, %v1244
    %v1246 = vsel %vm964, %v956, %v1245
    %v1247 = vsel %vm966, %v957, %v1246
    %v1248 = vsel %vm968, %v1132, %v1247
    %v1249 = vsel %vm970, %v1235, %v1248
    %v1250 = vsel %vm979, %v1242, 0
    %v1252 = vsel %vm979, %v1249, 0
    %1254 = vmatpush.msra.mxu0 0.0
    %1255 = vmatpush.msra.mxu0 %v1230
    %1256 = vmatpush.msra.mxu0 %v1228
    %1257 = vmatpush.msra.mxu0 %v1226
    %1258 = vmatpush.msra.mxu0 %v1224
    %1259 = vmatpush.msra.mxu0 %v1222
    %1260 = vmatpush.msra.mxu0 %v1220
    %1261 = vmatpush.msra.mxu0 %v1218
    %1262 = vmatpush.msra.mxu0 %v1216
    %1263 = vmatpush.msra.mxu0 %v1214
    %1264 = vmatpush.msra.mxu0 %v1212
    %1265 = vmatpush.msra.mxu0 %v1210
    %1266 = vmatpush.msra.mxu0 %v1208
    %1267 = vmatpush.msra.mxu0 %v1206
    %1268 = vmatpush.msra.mxu0 %v1204
    %1269 = vmatpush.msra.mxu0 %v1202
    %1270 = vmatmul.f32.gmra.mxu0 %v1250
    %v1271 = vpop.f32.mrf.mxu0
    %v1272 = vadd.f32 0.0, %v1271
    %1273 = vmatmul.f32.gmra.mxu0 %v1252
    %v1274 = vpop.f32.mrf.mxu0
    %v1275 = vadd.f32 0.0, %v1274
    %1276 = vdwg.mxu0
    %1277 = vmatpush.msra.mxu0 0.0
    %1278 = vmatpush.msra.mxu0 %v1231
    %1279 = vmatpush.msra.mxu0 %v1229
    %1280 = vmatpush.msra.mxu0 %v1227
    %1281 = vmatpush.msra.mxu0 %v1225
    %1282 = vmatpush.msra.mxu0 %v1223
    %1283 = vmatpush.msra.mxu0 %v1221
    %1284 = vmatpush.msra.mxu0 %v1219
    %1285 = vmatpush.msra.mxu0 %v1217
    %1286 = vmatpush.msra.mxu0 %v1215
    %1287 = vmatpush.msra.mxu0 %v1213
    %1288 = vmatpush.msra.mxu0 %v1211
    %1289 = vmatpush.msra.mxu0 %v1209
    %1290 = vmatpush.msra.mxu0 %v1207
    %1291 = vmatpush.msra.mxu0 %v1205
    %1292 = vmatpush.msra.mxu0 %v1203
    %1293 = vmatmul.f32.gmra.mxu0 %v1250
    %v1294 = vpop.f32.mrf.mxu0
    %v1295 = vadd.f32 0.0, %v1294
    %1296 = vmatmul.f32.gmra.mxu0 %v1252
    %v1297 = vpop.f32.mrf.mxu0
    %v1298 = vadd.f32 0.0, %v1297
    %1299 = vdwg.mxu0
    %v1300 = vadd.f32 %v1197, %v1272
    %v1301 = vadd.f32 %v1198, %v1295
    %v1302 = vadd.f32 %v1199, %v1275
    %v1303 = vadd.f32 %v1200, %v1298
    %s1304 = scalar_lea.vmem %s3, 960
    %v1305 = vld [vmem:[%s1304] sm:$0xff]
    %v1306 = vld [vmem:[%s1304 + $0x8] sm:$0xff]
    %v1307 = vld [vmem:[%s1304 + $0x10] sm:$0xff]
    %v1308 = vld [vmem:[%s1304 + $0x18] sm:$0xff]
    %v1309 = vld [vmem:[%s1304 + $0x20] sm:$0xff]
    %v1310 = vld [vmem:[%s1304 + $0x28] sm:$0xff]
    %v1311 = vld [vmem:[%s1304 + $0x30] sm:$0xff]
    %v1312 = vld [vmem:[%s1304 + $0x38] sm:$0xff]
    %v1313 = vld [vmem:[%s1304 + $0x40] sm:$0xff]
    %v1314 = vld [vmem:[%s1304 + $0x48] sm:$0xff]
    %v1315 = vld [vmem:[%s1304 + $0x50] sm:$0xff]
    %v1316 = vld [vmem:[%s1304 + $0x58] sm:$0xff]
    %v1317 = vld [vmem:[%s1304 + $0x60] sm:$0xff]
    %v1318 = vld [vmem:[%s1304 + $0x68] sm:$0xff]
    %v1319 = vld [vmem:[%s1304 + $0x70] sm:$0xff]
    %v1320 = vld [vmem:[%s1304 + $0x78] sm:$0xff]
    %v1321 = vld [vmem:[%s1304 + $0x80] sm:$0xff]
    %v1322 = vld [vmem:[%s1304 + $0x88] sm:$0xff]
    %v1323 = vld [vmem:[%s1304 + $0x90] sm:$0xff]
    %v1324 = vld [vmem:[%s1304 + $0x98] sm:$0xff]
    %v1325 = vld [vmem:[%s1304 + $0xa0] sm:$0xff]
    %v1326 = vld [vmem:[%s1304 + $0xa8] sm:$0xff]
    %v1327 = vld [vmem:[%s1304 + $0xb0] sm:$0xff]
    %v1328 = vld [vmem:[%s1304 + $0xb8] sm:$0xff]
    %v1329 = vld [vmem:[%s1304 + $0xc0] sm:$0xff]
    %v1330 = vld [vmem:[%s1304 + $0xc8] sm:$0xff]
    %v1331 = vld [vmem:[%s1304 + $0xd0] sm:$0xff]
    %v1332 = vld [vmem:[%s1304 + $0xd8] sm:$0xff]
    %v1333 = vld [vmem:[%s1304 + $0xe0] sm:$0xff]
    %v1334 = vld [vmem:[%s1304 + $0xe8] sm:$0xff]
    %v1337 = vperm.slane %v852, 0
    %v1338 = vperm.slane %v864, 0
    %v1339 = vsel %vm958, %v946, %v945
    %v1340 = vsel %vm960, %v947, %v1339
    %v1341 = vsel %vm962, %v948, %v1340
    %v1342 = vsel %vm964, %v949, %v1341
    %v1343 = vsel %vm966, %v1131, %v1342
    %v1344 = vsel %vm968, %v1234, %v1343
    %v1345 = vsel %vm970, %v1337, %v1344
    %v1346 = vsel %vm958, %v954, %v953
    %v1347 = vsel %vm960, %v955, %v1346
    %v1348 = vsel %vm962, %v956, %v1347
    %v1349 = vsel %vm964, %v957, %v1348
    %v1350 = vsel %vm966, %v1132, %v1349
    %v1351 = vsel %vm968, %v1235, %v1350
    %v1352 = vsel %vm970, %v1338, %v1351
    %v1353 = vsel %vm979, %v1345, 0
    %v1355 = vsel %vm979, %v1352, 0
    %1357 = vmatpush.msra.mxu0 0.0
    %1358 = vmatpush.msra.mxu0 %v1333
    %1359 = vmatpush.msra.mxu0 %v1331
    %1360 = vmatpush.msra.mxu0 %v1329
    %1361 = vmatpush.msra.mxu0 %v1327
    %1362 = vmatpush.msra.mxu0 %v1325
    %1363 = vmatpush.msra.mxu0 %v1323
    %1364 = vmatpush.msra.mxu0 %v1321
    %1365 = vmatpush.msra.mxu0 %v1319
    %1366 = vmatpush.msra.mxu0 %v1317
    %1367 = vmatpush.msra.mxu0 %v1315
    %1368 = vmatpush.msra.mxu0 %v1313
    %1369 = vmatpush.msra.mxu0 %v1311
    %1370 = vmatpush.msra.mxu0 %v1309
    %1371 = vmatpush.msra.mxu0 %v1307
    %1372 = vmatpush.msra.mxu0 %v1305
    %1373 = vmatmul.f32.gmra.mxu0 %v1353
    %v1374 = vpop.f32.mrf.mxu0
    %v1375 = vadd.f32 0.0, %v1374
    %1376 = vmatmul.f32.gmra.mxu0 %v1355
    %v1377 = vpop.f32.mrf.mxu0
    %v1378 = vadd.f32 0.0, %v1377
    %1379 = vdwg.mxu0
    %1380 = vmatpush.msra.mxu0 0.0
    %1381 = vmatpush.msra.mxu0 %v1334
    %1382 = vmatpush.msra.mxu0 %v1332
    %1383 = vmatpush.msra.mxu0 %v1330
    %1384 = vmatpush.msra.mxu0 %v1328
    %1385 = vmatpush.msra.mxu0 %v1326
    %1386 = vmatpush.msra.mxu0 %v1324
    %1387 = vmatpush.msra.mxu0 %v1322
    %1388 = vmatpush.msra.mxu0 %v1320
    %1389 = vmatpush.msra.mxu0 %v1318
    %1390 = vmatpush.msra.mxu0 %v1316
    %1391 = vmatpush.msra.mxu0 %v1314
    %1392 = vmatpush.msra.mxu0 %v1312
    %1393 = vmatpush.msra.mxu0 %v1310
    %1394 = vmatpush.msra.mxu0 %v1308
    %1395 = vmatpush.msra.mxu0 %v1306
    %1396 = vmatmul.f32.gmra.mxu0 %v1353
    %v1397 = vpop.f32.mrf.mxu0
    %v1398 = vadd.f32 0.0, %v1397
    %1399 = vmatmul.f32.gmra.mxu0 %v1355
    %v1400 = vpop.f32.mrf.mxu0
    %v1401 = vadd.f32 0.0, %v1400
    %1402 = vdwg.mxu0
    %v1403 = vadd.f32 %v1300, %v1375
    %v1404 = vadd.f32 %v1301, %v1398
    %v1405 = vadd.f32 %v1302, %v1378
    %v1406 = vadd.f32 %v1303, %v1401
    %v1407 = vld [vmem:[%s4] sm:$0x3]
    %v1409 = vperm.slane %v1407, 0
    %v1410 = vperm.slane %v1407, 1
    %v1413 = vadd.f32 %v1403, %v1409
    %v1414 = vadd.f32 %v1404, %v1410
    %v1415 = vadd.f32 %v1405, %v1409
    %v1416 = vadd.f32 %v1406, %v1410
    %1421 = vrot.lane.b32.xlu0 %v1413, 48
    %v1422 = vpop.permute.xlu0 %1421
    %1423 = vrot.lane.b32.xlu0 %v1414, 48
    %v1424 = vpop.permute.xlu0 %1423
    %1425 = vrot.lane.b32.xlu0 %v1415, 48
    %v1426 = vpop.permute.xlu0 %1425
    %1427 = vrot.lane.b32.xlu0 %v1416, 48
    %v1428 = vpop.permute.xlu0 %1427
    %vm1429 = vcmask 392192
    %v1430 = vsel %vm1429, %v1422, %v1424
    %v1431 = vsel %vm1429, %v1426, %v1428
    %v1434 = vmax.f32 %v1413, %v1430
    %v1435 = vmax.f32 %v1415, %v1431
    %v1438 = vrot.slane %v1434, 2
    %v1439 = vrot.slane %v1434, 4
    %v1440 = vrot.slane %v1434, 6
    %v1441 = vrot.slane %v1435, 2
    %v1442 = vrot.slane %v1435, 4
    %v1443 = vrot.slane %v1435, 6
    %v1450 = vrot.slane %v1434, 7
    %v1451 = vrot.slane %v1450, 2
    %v1452 = vrot.slane %v1438, 7
    %v1453 = vrot.slane %v1452, 2
    %v1454 = vrot.slane %v1439, 7
    %v1455 = vrot.slane %v1454, 2
    %v1456 = vrot.slane %v1440, 7
    %v1457 = vrot.slane %v1456, 2
    %v1458 = vrot.slane %v1435, 7
    %v1459 = vrot.slane %v1458, 2
    %v1460 = vrot.slane %v1441, 7
    %v1461 = vrot.slane %v1460, 2
    %v1462 = vrot.slane %v1442, 7
    %v1463 = vrot.slane %v1462, 2
    %v1464 = vrot.slane %v1443, 7
    %v1465 = vrot.slane %v1464, 2
    %v1474 = vmax.f32 %v1434, %v1451
    %v1475 = vmax.f32 %v1438, %v1453
    %v1476 = vmax.f32 %v1439, %v1455
    %v1477 = vmax.f32 %v1440, %v1457
    %v1478 = vmax.f32 %v1435, %v1459
    %v1479 = vmax.f32 %v1441, %v1461
    %v1480 = vmax.f32 %v1442, %v1463
    %v1481 = vmax.f32 %v1443, %v1465
    %v1482 = vmax.f32 %v1474, 0.0
    %v1483 = vmax.f32 %v1475, 0.0
    %v1484 = vmax.f32 %v1476, 0.0
    %v1485 = vmax.f32 %v1477, 0.0
    %v1486 = vmax.f32 %v1478, 0.0
    %v1487 = vmax.f32 %v1479, 0.0
    %v1488 = vmax.f32 %v1480, 0.0
    %v1489 = vmax.f32 %v1481, 0.0
    %v1498 = vsel %vm964, %v1482, %v1482
    %v1499 = vsel %vm968, %v1482, %v1498
    %v1500 = vrot.slane %v1483, 7
    %v1501 = vsel %vm958, %v1500, %v1499
    %v1502 = vsel %vm962, %v1500, %v1501
    %v1503 = vsel %vm966, %v1500, %v1502
    %v1504 = vsel %vm970, %v1500, %v1503
    %v1505 = vsel %vm964, %v1484, %v1484
    %v1506 = vsel %vm968, %v1484, %v1505
    %v1507 = vrot.slane %v1485, 7
    %v1508 = vsel %vm958, %v1507, %v1506
    %v1509 = vsel %vm962, %v1507, %v1508
    %v1510 = vsel %vm966, %v1507, %v1509
    %v1511 = vsel %vm970, %v1507, %v1510
    %v1512 = vsel %vm964, %v1486, %v1486
    %v1513 = vsel %vm968, %v1486, %v1512
    %v1514 = vrot.slane %v1487, 7
    %v1515 = vsel %vm958, %v1514, %v1513
    %v1516 = vsel %vm962, %v1514, %v1515
    %v1517 = vsel %vm966, %v1514, %v1516
    %v1518 = vsel %vm970, %v1514, %v1517
    %v1519 = vsel %vm964, %v1488, %v1488
    %v1520 = vsel %vm968, %v1488, %v1519
    %v1521 = vrot.slane %v1489, 7
    %v1522 = vsel %vm958, %v1521, %v1520
    %v1523 = vsel %vm962, %v1521, %v1522
    %v1524 = vsel %vm966, %v1521, %v1523
    %v1525 = vsel %vm970, %v1521, %v1524
    %v1530 = vrot.slane %v1518, 4
    %vm1531 = vcmask 1047556
    %v1532 = vsel %vm1531, %v1530, %v1504
    %v1534 = vunpack.c.l.s4 1934713408
    %v1535 = vunpack.c.0.s8 %v1534
    %v1536 = vperm.slane %v1532, %v1535
    %v1537 = vrot.slane %v1536, 4
    %v1538 = vsel %vm1531, 0.0, %v1537
    %v1539 = vrot.slane %v1525, 4
    %v1540 = vsel %vm1531, %v1539, %v1511
    %v1542 = vunpack.c.l.s4 1934713408
    %v1543 = vunpack.c.0.s8 %v1542
    %v1544 = vperm.slane %v1540, %v1543
    %v1545 = vrot.slane %v1544, 4
    %v1546 = vsel %vm1531, 0.0, %v1545
    %1548 = vst [vmem:[#allocation1] ss:$4 sm:$0xff] %v1538
    %v1549 = vld.sshfl [vmem:[#allocation1] sm:$0xff pattern:$0x73625140]
    %1550 = vrot.lane.b32.xlu0 %v1549, 80
    %v1551 = vpop.permute.xlu0 %1550
    %1554 = vst [vmem:[#allocation1] ss:$4 sm:$0xff] %v1544
    %v1555 = vld.sshfl [vmem:[#allocation1] sm:$0xff pattern:$0x73625140]
    %1556 = vrot.lane.b32.xlu0 %v1555, 32
    %v1557 = vpop.permute.xlu0 %1556
    %1560 = vst [vmem:[#allocation1] ss:$4 sm:$0xff] %v1546
    %v1561 = vld.sshfl [vmem:[#allocation1] sm:$0xff pattern:$0x73625140]
    %1562 = vrot.lane.b32.xlu0 %v1561, 112
    %v1563 = vpop.permute.xlu0 %1562
    %vm1565 = vcmask 654336
    %v1566 = vsel %vm1565, %v1536, %v1551
    %vm1567 = vcmask 261120
    %v1568 = vsel %vm1567, %v1551, %v1557
    %vm1569 = vcmask 916480
    %v1570 = vsel %vm1569, %v1568, %v1563
    %v1571 = vld [vmem:[%s5] sm:$0xff]
    %v1572 = vld [vmem:[%s5 + $0x8] sm:$0xff]
    %v1573 = vld [vmem:[%s5 + $0x10] sm:$0xff]
    %v1574 = vld [vmem:[%s5 + $0x18] sm:$0xff]
    %v1575 = vld [vmem:[%s5 + $0x20] sm:$0xff]
    %v1576 = vld [vmem:[%s5 + $0x28] sm:$0xff]
    %v1577 = vld [vmem:[%s5 + $0x30] sm:$0xff]
    %v1578 = vld [vmem:[%s5 + $0x38] sm:$0xff]
    %v1579 = vld [vmem:[%s5 + $0x40] sm:$0xff]
    %v1580 = vld [vmem:[%s5 + $0x48] sm:$0xff]
    %v1581 = vld [vmem:[%s5 + $0x50] sm:$0xff]
    %v1582 = vld [vmem:[%s5 + $0x58] sm:$0xff]
    %v1583 = vld [vmem:[%s5 + $0x60] sm:$0xff]
    %v1584 = vld [vmem:[%s5 + $0x68] sm:$0xff]
    %v1585 = vld [vmem:[%s5 + $0x70] sm:$0xff]
    %v1586 = vld [vmem:[%s5 + $0x78] sm:$0xff]
    %v1587 = vld [vmem:[%s5 + $0x80] sm:$0xff]
    %v1588 = vld [vmem:[%s5 + $0x88] sm:$0xff]
    %v1589 = vld [vmem:[%s5 + $0x90] sm:$0xff]
    %v1590 = vld [vmem:[%s5 + $0x98] sm:$0xff]
    %v1591 = vld [vmem:[%s5 + $0xa0] sm:$0xff]
    %v1592 = vld [vmem:[%s5 + $0xa8] sm:$0xff]
    %v1593 = vld [vmem:[%s5 + $0xb0] sm:$0xff]
    %v1594 = vld [vmem:[%s5 + $0xb8] sm:$0xff]
    %v1595 = vld [vmem:[%s5 + $0xc0] sm:$0xff]
    %v1596 = vld [vmem:[%s5 + $0xc8] sm:$0xff]
    %v1597 = vld [vmem:[%s5 + $0xd0] sm:$0xff]
    %v1598 = vld [vmem:[%s5 + $0xd8] sm:$0xff]
    %v1599 = vld [vmem:[%s5 + $0xe0] sm:$0xff]
    %v1600 = vld [vmem:[%s5 + $0xe8] sm:$0xff]
    %v1601 = vld [vmem:[%s5 + $0xf0] sm:$0xff]
    %v1602 = vld [vmem:[%s5 + $0xf8] sm:$0xff]
    %v1603 = vld [vmem:[%s5 + $0x100] sm:$0xff]
    %v1604 = vld [vmem:[%s5 + $0x108] sm:$0xff]
    %v1605 = vld [vmem:[%s5 + $0x110] sm:$0xff]
    %v1606 = vld [vmem:[%s5 + $0x118] sm:$0xff]
    %v1607 = vld [vmem:[%s5 + $0x120] sm:$0xff]
    %v1608 = vld [vmem:[%s5 + $0x128] sm:$0xff]
    %v1609 = vld [vmem:[%s5 + $0x130] sm:$0xff]
    %v1610 = vld [vmem:[%s5 + $0x138] sm:$0xff]
    %v1611 = vld [vmem:[%s6] sm:$0x1]
    %v1613 = vperm.slane %v1611, 0
    %vm1615 = vcmask 523264
    %v1616 = vsel %vm1615, %v1563, 0
    %1618 = vmatpush.msra.mxu0 %v1586
    %1619 = vmatpush.msra.mxu0 %v1585
    %1620 = vmatpush.msra.mxu0 %v1584
    %1621 = vmatpush.msra.mxu0 %v1583
    %1622 = vmatpush.msra.mxu0 %v1582
    %1623 = vmatpush.msra.mxu0 %v1581
    %1624 = vmatpush.msra.mxu0 %v1580
    %1625 = vmatpush.msra.mxu0 %v1579
    %1626 = vmatpush.msra.mxu0 %v1578
    %1627 = vmatpush.msra.mxu0 %v1577
    %1628 = vmatpush.msra.mxu0 %v1576
    %1629 = vmatpush.msra.mxu0 %v1575
    %1630 = vmatpush.msra.mxu0 %v1574
    %1631 = vmatpush.msra.mxu0 %v1573
    %1632 = vmatpush.msra.mxu0 %v1572
    %1633 = vmatpush.msra.mxu0 %v1571
    %1634 = vmatmul.f32.gmra.mxu0 %v1566
    %v1635 = vpop.f32.mrf.mxu0
    %v1636 = vadd.f32 %v1613, %v1635
    %1637 = vdwg.mxu0
    %1638 = vmatpush.msra.mxu0 %v1602
    %1639 = vmatpush.msra.mxu0 %v1601
    %1640 = vmatpush.msra.mxu0 %v1600
    %1641 = vmatpush.msra.mxu0 %v1599
    %1642 = vmatpush.msra.mxu0 %v1598
    %1643 = vmatpush.msra.mxu0 %v1597
    %1644 = vmatpush.msra.mxu0 %v1596
    %1645 = vmatpush.msra.mxu0 %v1595
    %1646 = vmatpush.msra.mxu0 %v1594
    %1647 = vmatpush.msra.mxu0 %v1593
    %1648 = vmatpush.msra.mxu0 %v1592
    %1649 = vmatpush.msra.mxu0 %v1591
    %1650 = vmatpush.msra.mxu0 %v1590
    %1651 = vmatpush.msra.mxu0 %v1589
    %1652 = vmatpush.msra.mxu0 %v1588
    %1653 = vmatpush.msra.mxu0 %v1587
    %1654 = vmatmul.f32.gmra.mxu0 %v1570
    %v1655 = vpop.f32.mrf.mxu0
    %v1656 = vadd.f32 %v1636, %v1655
    %1657 = vdwg.mxu0
    %1658 = vmatpush.msra.mxu0 0.0
    %1659 = vmatpush.msra.mxu0 0.0
    %1660 = vmatpush.msra.mxu0 0.0
    %1661 = vmatpush.msra.mxu0 0.0
    %1662 = vmatpush.msra.mxu0 0.0
    %1663 = vmatpush.msra.mxu0 0.0
    %1664 = vmatpush.msra.mxu0 0.0
    %1665 = vmatpush.msra.mxu0 0.0
    %1666 = vmatpush.msra.mxu0 %v1610
    %1667 = vmatpush.msra.mxu0 %v1609
    %1668 = vmatpush.msra.mxu0 %v1608
    %1669 = vmatpush.msra.mxu0 %v1607
    %1670 = vmatpush.msra.mxu0 %v1606
    %1671 = vmatpush.msra.mxu0 %v1605
    %1672 = vmatpush.msra.mxu0 %v1604
    %1673 = vmatpush.msra.mxu0 %v1603
    %1674 = vmatmul.f32.gmra.mxu0 %v1616
    %v1675 = vpop.f32.mrf.mxu0
    %v1676 = vadd.f32 %v1656, %v1675
    %1677 = vdwg.mxu0
    %v1678 = vmax.f32 %v1676, 0.0
    %v1679 = vld [vmem:[%s7] sm:$0xff]
    %v1680 = vld [vmem:[%s7 + $0x8] sm:$0xff]
    %v1681 = vld [vmem:[%s7 + $0x10] sm:$0xff]
    %v1682 = vld [vmem:[%s7 + $0x18] sm:$0xff]
    %v1683 = vld [vmem:[%s7 + $0x20] sm:$0xff]
    %v1684 = vld [vmem:[%s7 + $0x28] sm:$0xff]
    %v1685 = vld [vmem:[%s7 + $0x30] sm:$0x3]
    %v1686 = vld [vmem:[%s8] sm:$0x1]
    %v1688 = vperm.slane %v1686, 0
    %vm1690 = vcmask 408576
    %v1692 = vsel %vm1690, %v1678, 0
    %vm1694 = vcmask 1041408
    %v1696 = vsel %vm1694, %v1685, 0
    %1698 = vmatpush.msra.mxu0 0.0
    %1699 = vmatpush.msra.mxu0 0.0
    %1700 = vmatpush.msra.mxu0 0.0
    %1701 = vmatpush.msra.mxu0 0.0
    %1702 = vmatpush.msra.mxu0 0.0
    %1703 = vmatpush.msra.mxu0 0.0
    %1704 = vmatpush.msra.mxu0 0.0
    %1705 = vmatpush.msra.mxu0 0.0
    %1706 = vmatpush.msra.mxu0 0.0
    %1707 = vmatpush.msra.mxu0 %v1696
    %1708 = vmatpush.msra.mxu0 %v1684
    %1709 = vmatpush.msra.mxu0 %v1683
    %1710 = vmatpush.msra.mxu0 %v1682
    %1711 = vmatpush.msra.mxu0 %v1681
    %1712 = vmatpush.msra.mxu0 %v1680
    %1713 = vmatpush.msra.mxu0 %v1679
    %1714 = vmatmul.f32.gmra.mxu0 %v1692
    %v1715 = vpop.f32.mrf.mxu0
    %v1716 = vadd.f32 %v1688, %v1715
    %1717 = vdwg.mxu0
    %vm1718 = vcmask 74752
    %v1719 = vsel %vm1718, %v1716, -inf
    %1720 = vmax.xlane.f32.xlu0 %v1719
    %v1721 = vpop.xlane.xlu0 %1720
    %v1722 = vsub.f32 %v1716, %v1721
    %v1723 = vmul.f32 %v1722, 1.442695
    %v1724 = vpow.pop %v1723
    %v1725 = vsel %vm1718, %v1724, 0.0
    %1726 = vadd.xlane.f32.xlu0 %v1725
    %v1727 = vpop.xlane.xlu0 %1726
    %v1728 = vlog2.pop %v1727
    %v1729 = vmul.f32 %v1728, 0.6931472
    %v1730 = vsub.f32 %v1722, %v1729
    %1731 = vst.msk [vmem:[#allocation2] sm:$0x3] %vm1718, %v1730
    // Predicated region
    $region38: #{my_network_forward.1} parent=1 // pred_check
      _
    $region39: #{my_network_forward.1} parent=1 // pred_check_branch
      %1733 = sbr.rel (0) target = $region41
    $region40: #{my_network_forward.1} parent=1 // pred_region
      %1735 = vsyncadd [#allocation3], 0
      %s1737 = sshll.u32 [#allocation2], 4
      %s1738 = int_to_ptr.vmem [resolvable:$true] %s1737
      %s1739 = sshll.u32 %s9, 4
      %s1740 = int_to_ptr.hbm [resolvable:$true] %s1739
      %1742 = dma.vmem_to_hbm [thread:$0]  %s1738, 32, %s1740, [#allocation3]
    $region41: #{my_network_forward.1} parent=1 // pred_fallthru
      _
    // Predicated region
    $region42: #{my_network_forward.1} parent=1 // pred_check
      _
    $region43: #{my_network_forward.1} parent=1 // pred_check_branch
      %1744 = sbr.rel (0) target = $region45
    $region44: #{my_network_forward.1} parent=1 // pred_region
      %1746 = dma.done [#allocation3], 32
    $region45: #{my_network_forward.1} parent=1 // pred_fallthru
      _
    %1747 = vsyncpa [#allocation3], 1

</llo_original>
